<compile_context>
chip_gen: v7x
topology: tpu7x:2x2x1
jax: 0.10.0
libtpu: 0.0.40
codegen_flags: <defaults>
</compile_context>

<pallas_src>
import functools

import jax
import jax.numpy as jnp
from jax import lax
from jax.experimental import pallas as pl
from jax.experimental.pallas import tpu as pltpu


_SUB = 8   # sublane-aligned halo size of the in-kernel zero-pad staging scratch


def _round_up(x, m):
    return (x + m - 1) // m * m


# ---------------------------------------------------------------------------
# Kernel 1: fused conv stack, time-major, grid over batch groups ("parallel").
# ---------------------------------------------------------------------------
def _conv_stack_kernel(*refs, T, K, n_layers, cins):
    pad = (K - 1) // 2
    x_ref, m_ref = refs[0], refs[1]
    w_refs = [refs[2 + 2 * l] for l in range(n_layers)]
    b_refs = [refs[3 + 2 * l] for l in range(n_layers)]
    o_ref = refs[2 + 2 * n_layers]
    pad_scr = refs[3 + 2 * n_layers]              # (T + 2*_SUB, Bb, Cmax) f32

    Bb = x_ref.shape[1]
    Cmax = pad_scr.shape[2]
    m = m_ref[...]                                # (T, Bb, 1)

    # Zero only the time halos; the interior is fully overwritten before every
    # read.  Done every grid step (not just program_id==0) so a megacore split
    # of the "parallel" batch axis stays correct (scratch is per-core).
    halo = jnp.zeros((_SUB, Bb, Cmax), pad_scr.dtype)
    pad_scr[0:_SUB] = halo
    pad_scr[_SUB + T:_SUB + T + _SUB] = halo

    h = x_ref[...].astype(jnp.float32)            # (T, Bb, Cin0)
    base = _SUB - pad
    for l in range(n_layers):
        cin = cins[l]
        cout = w_refs[l].shape[2]
        # mask invalid frames, stage into the zero-padded (time-major) buffer
        pad_scr[_SUB:_SUB + T, :, :cin] = h * m
        # accumulated-tap conv: K small matmuls (same MXU FLOPs as fused
        # im2col, no lane-misaligned concat when cin % 128 != 0); taps shift
        # along the major dim, so slices are tile-granular (no sublane shifts).
        acc = jnp.zeros((T * Bb, cout), jnp.float32)
        for k in range(K):
            slab = pad_scr[base + k:base + k + T, :, :cin]       # (T, Bb, cin)
            acc = acc + jnp.dot(
                slab.reshape(T * Bb, cin).astype(jnp.bfloat16),
                w_refs[l][k],                                     # (cin, cout) bf16
                preferred_element_type=jnp.float32)
        h = jnp.maximum(acc + b_refs[l][...], 0.0).reshape(T, Bb, cout)
        # TODO(synk): dropout between conv layers omitted (eval mode).

    o_ref[...] = h.astype(o_ref.dtype)


def conv_stack(x_tbc, mask_tb1, conv_params, *, batch_block):
    # x_tbc: (T, B_pad, Cin0) f32, mask: (T, B_pad, 1) f32 -> (T, B_pad, C) bf16
    T, B_pad, Cin0 = x_tbc.shape
    K, _, C = conv_params[0][0].shape
    n_layers = len(conv_params)
    pad = (K - 1) // 2
    assert pad <= _SUB, "kernel_size too large for the fixed pad halo"
    Bb = batch_block
    assert B_pad % Bb == 0
    cins = tuple(Cin0 if l == 0 else conv_params[l - 1][0].shape[2]
                 for l in range(n_layers))
    Cmax = max(cins + (C,))

    in_specs = [pl.BlockSpec((T, Bb, Cin0), lambda b: (0, b, 0)),
                pl.BlockSpec((T, Bb, 1), lambda b: (0, b, 0))]
    args = [x_tbc, mask_tb1]
    for (w, bias) in conv_params:
        wb = w.astype(jnp.bfloat16)                # (K, cin, C) bf16 on the MXU
        args += [wb, bias]
        in_specs += [pl.BlockSpec(wb.shape, lambda b: (0, 0, 0)),
                     pl.BlockSpec(bias.shape, lambda b: (0, 0))]

    return pl.pallas_call(
        functools.partial(_conv_stack_kernel, T=T, K=K,
                          n_layers=n_layers, cins=cins),
        grid=(B_pad // Bb,),
        out_shape=jax.ShapeDtypeStruct((T, B_pad, C), jnp.bfloat16),
        in_specs=in_specs,
        out_specs=pl.BlockSpec((T, Bb, C), lambda b: (0, b, 0)),
        scratch_shapes=[pltpu.VMEM((T + 2 * _SUB, Bb, Cmax), jnp.float32)],
        compiler_params=pltpu.CompilerParams(
            dimension_semantics=("parallel",),
            vmem_limit_bytes=64 * 1024 * 1024),
    )(*args)


# ---------------------------------------------------------------------------
# Kernel 2: BiLSTM (length-masked, both directions) + dense, T-chunked grid.
# ---------------------------------------------------------------------------
def _bilstm_dense_kernel(xf_ref, xb_ref, mf_ref, mb_ref,
                         wihf_ref, wihb_ref, bf_ref, bb_ref,
                         wblk_ref, wdf_ref, wdb_ref, bd_ref,
                         o_ref,
                         gf_scr, gb_scr, hfb, cfb, of_scr, ob_scr,
                         *, H, Tc, B):
    j = pl.program_id(0)
    nc = pl.num_programs(0)

    @pl.when(j == 0)
    def _():
        hfb[...] = jnp.zeros_like(hfb)
        cfb[...] = jnp.zeros_like(cfb)

    # Hoisted input projection for this chunk (both directions): bf16 MXU,
    # f32 accumulation, biases folded in.  Chunk x blocks are auto-pipelined.
    gf_scr[...] = (jnp.dot(xf_ref[...], wihf_ref[...],
                           preferred_element_type=jnp.float32) + bf_ref[...])
    gb_scr[...] = (jnp.dot(xb_ref[...], wihb_ref[...],
                           preferred_element_type=jnp.float32) + bb_ref[...])

    wblk = wblk_ref[...]              # (2H, 8H) block-diag recurrent weights
    fwd_base = j * Tc                 # first global time of the fwd chunk
    bwd_base = (nc - 1 - j) * Tc      # first global time of the bwd chunk

    def cell(pre, c):                 # PyTorch gate order: i, f, g, o
        i_g = jax.nn.sigmoid(pre[:, 0:H])
        f_g = jax.nn.sigmoid(pre[:, H:2 * H])
        g_g = jnp.tanh(pre[:, 2 * H:3 * H])
        o_g = jax.nn.sigmoid(pre[:, 3 * H:4 * H])
        c_new = f_g * c + i_g * g_g
        return o_g * jnp.tanh(c_new), c_new

    def step(i, carry):
        tf = fwd_base + i                            # fwd global time (ascending)
        tb = bwd_base + (Tc - 1 - i)                 # bwd global time (descending)
        rf = pl.multiple_of(i * B, 8)                # chunk-local row offsets
        rb = pl.multiple_of((Tc - 1 - i) * B, 8)
        gf = gf_scr[pl.ds(rf, B)]                    # (B, 4H)
        gbv = gb_scr[pl.ds(rb, B)]
        m_f = mf_ref[pl.ds(rf, B)] > 0.0             # (B, 1) valid-frame mask
        m_b = mb_ref[pl.ds(rb, B)] > 0.0

        h_old = hfb[...]                             # (B, 2H)
        c_old = cfb[...]
        # one fused MXU push per step: [h_f | h_b] @ blockdiag(Whh_f, Whh_b)
        rec = jnp.dot(h_old.astype(jnp.bfloat16), wblk,
                      preferred_element_type=jnp.float32)          # (B, 8H)
        hf_new, cf_new = cell(gf + rec[:, 0:4 * H], c_old[:, 0:H])
        hb_new, cb_new = cell(gbv + rec[:, 4 * H:8 * H], c_old[:, H:2 * H])

        # pack_padded semantics: state frozen and outputs zero for t >= len
        hfb[:, 0:H] = jnp.where(m_f, hf_new, h_old[:, 0:H])
        hfb[:, H:2 * H] = jnp.where(m_b, hb_new, h_old[:, H:2 * H])
        cfb[:, 0:H] = jnp.where(m_f, cf_new, c_old[:, 0:H])
        cfb[:, H:2 * H] = jnp.where(m_b, cb_new, c_old[:, H:2 * H])
        of_scr[pl.ds(pl.multiple_of(tf * B, 8), B)] = (
            jnp.where(m_f, hf_new, 0.0).astype(of_scr.dtype))
        ob_scr[pl.ds(pl.multiple_of(tb * B, 8), B)] = (
            jnp.where(m_b, hb_new, 0.0).astype(ob_scr.dtype))
        return carry

    lax.fori_loop(0, Tc, step, 0, unroll=2)

    # Dense epilogue once every timestep has both direction outputs; the
    # (lane-dense, 128-padded) output block is written back once at the end.
    @pl.when(j == nc - 1)
    def _():
        yf = jnp.dot(of_scr[...], wdf_ref[...],
                     preferred_element_type=jnp.float32)
        yb = jnp.dot(ob_scr[...], wdb_ref[...],
                     preferred_element_type=jnp.float32)
        o_ref[...] = (yf + yb + bd_ref[...]).astype(o_ref.dtype)


def bilstm_dense(x_tbc, mask_tb1, lstm_params, dense_w, dense_b, *, t_chunk=None):
    # x_tbc: (T, B_pad, C) bf16, mask: (T, B_pad, 1) f32 -> (T*B_pad, D_pad) f32
    T, B_pad, C = x_tbc.shape
    H = lstm_params['w_hh_f'].shape[0]
    D = dense_w.shape[1]
    D_pad = _round_up(D, 128)

    if t_chunk is None:
        t_chunk = min(T, 128)
        while t_chunk > 1 and (T % t_chunk or (t_chunk * B_pad) % 16):
            t_chunk -= 1
    assert T % t_chunk == 0
    nc = T // t_chunk
    rows = t_chunk * B_pad

    x2 = x_tbc.reshape(T * B_pad, C)              # contiguous reshape, no copy
    m2 = mask_tb1.reshape(T * B_pad, 1)

    bf16 = jnp.bfloat16
    wihf = lstm_params['w_ih_f'].astype(bf16)     # (C, 4H)
    wihb = lstm_params['w_ih_b'].astype(bf16)
    b_f = lstm_params['b_f']                      # (1, 4H) f32 (ih+hh biases)
    b_b = lstm_params['b_b']
    wblk = jnp.zeros((2 * H, 8 * H), jnp.float32)
    wblk = wblk.at[:H, :4 * H].set(lstm_params['w_hh_f'])
    wblk = wblk.at[H:, 4 * H:].set(lstm_params['w_hh_b'])
    wblk = wblk.astype(bf16)
    # lane-dense output: zero-pad the dense layer to a 128-lane multiple
    wdf = jnp.pad(dense_w[:H], ((0, 0), (0, D_pad - D))).astype(bf16)
    wdb = jnp.pad(dense_w[H:], ((0, 0), (0, D_pad - D))).astype(bf16)
    bd = jnp.pad(dense_b, ((0, 0), (0, D_pad - D)))

    x_fwd = pl.BlockSpec((rows, C), lambda j: (j, 0))
    x_bwd = pl.BlockSpec((rows, C), lambda j: (nc - 1 - j, 0))
    m_fwd = pl.BlockSpec((rows, 1), lambda j: (j, 0))
    m_bwd = pl.BlockSpec((rows, 1), lambda j: (nc - 1 - j, 0))

    def full(a):
        return pl.BlockSpec(a.shape, lambda j: (0,) * a.ndim)

    return pl.pallas_call(
        functools.partial(_bilstm_dense_kernel, H=H, Tc=t_chunk, B=B_pad),
        grid=(nc,),
        out_shape=jax.ShapeDtypeStruct((T * B_pad, D_pad), jnp.float32),
        in_specs=[x_fwd, x_bwd, m_fwd, m_bwd,
                  full(wihf), full(wihb), full(b_f), full(b_b),
                  full(wblk), full(wdf), full(wdb), full(bd)],
        out_specs=pl.BlockSpec((T * B_pad, D_pad), lambda j: (0, 0)),
        scratch_shapes=[
            pltpu.VMEM((rows, 4 * H), jnp.float32),     # fwd-chunk gate preacts
            pltpu.VMEM((rows, 4 * H), jnp.float32),     # bwd-chunk gate preacts
            pltpu.VMEM((B_pad, 2 * H), jnp.float32),    # [h_fwd | h_bwd]
            pltpu.VMEM((B_pad, 2 * H), jnp.float32),    # [c_fwd | c_bwd]
            pltpu.VMEM((T * B_pad, H), jnp.bfloat16),   # fwd hidden sequence
            pltpu.VMEM((T * B_pad, H), jnp.bfloat16),   # bwd hidden sequence
        ],
        compiler_params=pltpu.CompilerParams(
            dimension_semantics=("arbitrary",),
            vmem_limit_bytes=64 * 1024 * 1024),
    )(x2, x2, m2, m2, wihf, wihb, b_f, b_b, wblk, wdf, wdb, bd)


# ---------------------------------------------------------------------------
# Full ConvLSTMLinear forward
# ---------------------------------------------------------------------------
def conv_lstm_linear_forward(context_nct, lens, params, *, t_chunk=None):
    # context_nct: (B, in_dim, T) (PyTorch NCT);  lens: (B,) int32
    B, _, T = context_nct.shape
    D = params['dense_w'].shape[1]
    Bb = 8 if B <= 8 else 16
    B_pad = _round_up(B, Bb)

    # time-major input, batch padded to a sublane multiple (cheap: small tensor)
    x = jnp.transpose(context_nct, (2, 0, 1))                       # (T, B, Cin)
    x = jnp.pad(x, ((0, 0), (0, B_pad - B), (0, 0)))
    lens_p = jnp.pad(lens, (0, B_pad - B))
    mask = (jnp.arange(T)[:, None] < lens_p[None, :]).astype(jnp.float32)[..., None]

    h = conv_stack(x, mask, params['convs'], batch_block=Bb)        # (T,B_pad,C) bf16
    y = bilstm_dense(h, mask, params['lstm'], params['dense_w'],
                     params['dense_b'], t_chunk=t_chunk)            # (T*B_pad, D_pad)
    y = y.reshape(T, B_pad, -1)[:, :B, :D]                          # (T, B, D)
    # matches `self.dense(context).permute(0, 2, 1)` -> (B, out_dim, T)
    return jnp.transpose(y, (1, 2, 0))


# ---------------------------------------------------------------------------
# Pure-JAX reference (f32 everywhere, same math) for correctness check.
# ---------------------------------------------------------------------------
def reference_forward(context_nct, lens, params):
    x = jnp.transpose(context_nct, (0, 2, 1)).astype(jnp.float32)
    B, T, _ = x.shape
    mask = (jnp.arange(T)[None, :] < lens[:, None]).astype(jnp.float32)[..., None]
    for (w, b) in params['convs']:
        K = w.shape[0]
        pad = (K - 1) // 2
        xp = jnp.pad(x * mask, ((0, 0), (pad, pad), (0, 0)))
        acc = jnp.zeros((B, T, w.shape[2]), jnp.float32)
        for k in range(K):
            acc = acc + jnp.einsum('btc,cd->btd', xp[:, k:k + T, :], w[k])
        x = jax.nn.relu(acc + b)
    p = params['lstm']
    H = p['w_hh_f'].shape[0]

    def run_dir(w_ih, w_hh, bias, reverse):
        h = jnp.zeros((B, H), jnp.float32)
        c = jnp.zeros((B, H), jnp.float32)
        outs = [None] * T
        ts = range(T - 1, -1, -1) if reverse else range(T)
        for t in ts:
            m = mask[:, t, :]
            g = x[:, t, :] @ w_ih + h @ w_hh + bias
            i_g = jax.nn.sigmoid(g[:, :H])
            f_g = jax.nn.sigmoid(g[:, H:2 * H])
            g_g = jnp.tanh(g[:, 2 * H:3 * H])
            o_g = jax.nn.sigmoid(g[:, 3 * H:])
            c_new = f_g * c + i_g * g_g
            h_new = o_g * jnp.tanh(c_new)
            h = m * h_new + (1.0 - m) * h
            c = m * c_new + (1.0 - m) * c
            outs[t] = m * h_new
        return jnp.stack(outs, axis=1)

    of = run_dir(p['w_ih_f'], p['w_hh_f'], p['b_f'], False)
    ob = run_dir(p['w_ih_b'], p['w_hh_b'], p['b_b'], True)
    xl = jnp.concatenate([of, ob], axis=-1)
    y = xl @ params['dense_w'] + params['dense_b']
    return jnp.transpose(y, (0, 2, 1))


# ---------------------------------------------------------------------------
# Deterministic synthetic parameters (shapes from ConvLSTMLinear.__init__).
# ---------------------------------------------------------------------------
def init_params(key, in_dim, n_channels, out_dim, n_layers, kernel_size):
    H = n_channels // 2
    keys = jax.random.split(key, 4 * n_layers + 10)
    ki = iter(range(len(keys)))

    convs = []
    for i in range(n_layers):
        cin = in_dim if i == 0 else n_channels
        # PyTorch Conv1d weight is (Cout, Cin, K); kernel expects (K, Cin, Cout)
        # (i.e. torch_w.transpose(2, 1, 0), no kernel flip: cross-correlation).
        w = 0.1 * jax.random.normal(keys[next(ki)],
                                    (kernel_size, cin, n_channels), jnp.float32)
        b = 0.1 * jax.random.normal(keys[next(ki)], (1, n_channels), jnp.float32)
        convs.append((w, b))

    def lstm_dir():
        # PyTorch: weight_ih (4H, C), weight_hh (4H, H), biases (4H,) each.
        w_ih = 0.1 * jax.random.normal(keys[next(ki)], (4 * H, n_channels), jnp.float32)
        w_hh = 0.1 * jax.random.normal(keys[next(ki)], (4 * H, H), jnp.float32)
        b_ih = 0.1 * jax.random.normal(keys[next(ki)], (4 * H,), jnp.float32)
        b_hh = 0.1 * jax.random.normal(keys[next(ki)], (4 * H,), jnp.float32)
        return (jnp.transpose(w_ih), jnp.transpose(w_hh),
                (b_ih + b_hh).reshape(1, 4 * H))

    w_ih_f, w_hh_f, b_f = lstm_dir()
    w_ih_b, w_hh_b, b_b = lstm_dir()

    dense_w = 0.1 * jax.random.normal(keys[next(ki)], (n_channels, out_dim), jnp.float32)
    dense_b = 0.1 * jax.random.normal(keys[next(ki)], (1, out_dim), jnp.float32)

    return {
        'convs': convs,
        'lstm': {'w_ih_f': w_ih_f, 'w_hh_f': w_hh_f, 'b_f': b_f,
                 'w_ih_b': w_ih_b, 'w_hh_b': w_hh_b, 'b_b': b_b},
        'dense_w': dense_w,
        'dense_b': dense_b,
    }


if __name__ == "__main__":
    B, in_dim, T = 2, 16, 16
    n_channels, out_dim = 64, 16
    n_layers, kernel_size = 2, 3

    key = jax.random.PRNGKey(0)
    k_x, k_p = jax.random.split(key)
    context = jax.random.normal(k_x, (B, in_dim, T), jnp.float32)   # NCT like PyTorch
    lens = jnp.array([T, 11], dtype=jnp.int32)
    params = init_params(k_p, in_dim, n_channels, out_dim, n_layers, kernel_size)

    # t_chunk=8 -> 2 chunks: exercises chunked gates + cross-chunk state carry.
    out = conv_lstm_linear_forward(context, lens, params, t_chunk=8)
    out = jax.block_until_ready(out)

    ref = jax.block_until_ready(reference_forward(context, lens, params))

    assert out.shape == (B, out_dim, T), out.shape
    assert bool(jnp.all(jnp.isfinite(out)))
    # bf16 at the MXU boundary (f32 accumulation / gate math) -> 1e-2 tolerance
    assert bool(jnp.allclose(out, ref, atol=1e-2, rtol=1e-2)), \
        float(jnp.max(jnp.abs(out - ref)))
    print("KERNEL_OK")
</pallas_src>

<mosaic_0001>
module attributes {stable_mosaic.version = 11 : i64} {
  func.func @_conv_stack_kernel(%arg0: i32, %arg1: memref<16x8x16xf32, #tpu.memory_space<vmem>>, %arg2: memref<16x8x1xf32, #tpu.memory_space<vmem>>, %arg3: memref<3x16x64xbf16, #tpu.memory_space<vmem>>, %arg4: memref<1x64xf32, #tpu.memory_space<vmem>>, %arg5: memref<3x64x64xbf16, #tpu.memory_space<vmem>>, %arg6: memref<1x64xf32, #tpu.memory_space<vmem>>, %arg7: memref<16x8x64xbf16, #tpu.memory_space<vmem>>, %arg8: memref<32x8x64xf32, #tpu.memory_space<vmem>>) attributes {dimension_semantics = [#tpu.dimension_semantics<parallel>], iteration_bounds = array<i64: 1>, scalar_prefetch = 0 : i64, scratch_operands = 1 : i64, tpu.core_type = #tpu.core_type<tc>, window_params = [{transform_indices = @transform_0, window_bounds = array<i64: 16, 8, 16>}, {transform_indices = @transform_1, window_bounds = array<i64: 16, 8, 1>}, {pipeline_mode = #tpu.pipeline_mode<synchronous>, transform_indices = @transform_2, window_bounds = array<i64: 3, 16, 64>}, {pipeline_mode = #tpu.pipeline_mode<synchronous>, transform_indices = @transform_3, window_bounds = array<i64: 1, 64>}, {pipeline_mode = #tpu.pipeline_mode<synchronous>, transform_indices = @transform_4, window_bounds = array<i64: 3, 64, 64>}, {pipeline_mode = #tpu.pipeline_mode<synchronous>, transform_indices = @transform_5, window_bounds = array<i64: 1, 64>}, {transform_indices = @transform_6, window_bounds = array<i64: 16, 8, 64>}]} {
    %c0 = arith.constant 0 : index
    %c0_0 = arith.constant 0 : index
    %c0_1 = arith.constant 0 : index
    %0 = vector.load %arg2[%c0, %c0_0, %c0_1] : memref<16x8x1xf32, #tpu.memory_space<vmem>>, vector<16x8x1xf32>
    %cst = arith.constant 0.000000e+00 : f32
    %1 = vector.broadcast %cst : f32 to vector<8x8x64xf32>
    %c0_2 = arith.constant 0 : index
    %c0_3 = arith.constant 0 : index
    %c0_4 = arith.constant 0 : index
    %2 = vector.load %arg8[%c0_2, %c0_3, %c0_4] : memref<32x8x64xf32, #tpu.memory_space<vmem>>, vector<8x8x64xf32>
    tpu.vector_store %arg8[%c0_2, %c0_3, %c0_4], %1 {strides = array<i32>} : memref<32x8x64xf32, #tpu.memory_space<vmem>>, vector<8x8x64xf32>,
    %c24 = arith.constant 24 : index
    %c0_5 = arith.constant 0 : index
    %c0_6 = arith.constant 0 : index
    %3 = vector.load %arg8[%c24, %c0_5, %c0_6] : memref<32x8x64xf32, #tpu.memory_space<vmem>>, vector<8x8x64xf32>
    tpu.vector_store %arg8[%c24, %c0_5, %c0_6], %1 {strides = array<i32>} : memref<32x8x64xf32, #tpu.memory_space<vmem>>, vector<8x8x64xf32>,
    %c0_7 = arith.constant 0 : index
    %c0_8 = arith.constant 0 : index
    %c0_9 = arith.constant 0 : index
    %4 = vector.load %arg1[%c0_7, %c0_8, %c0_9] : memref<16x8x16xf32, #tpu.memory_space<vmem>>, vector<16x8x16xf32>
    %5 = vector.broadcast %0 : vector<16x8x1xf32> to vector<16x8x16xf32>
    %6 = arith.mulf %4, %5 : vector<16x8x16xf32>
    %c8 = arith.constant 8 : index
    %c0_10 = arith.constant 0 : index
    %c0_11 = arith.constant 0 : index
    %7 = vector.load %arg8[%c8, %c0_10, %c0_11] : memref<32x8x64xf32, #tpu.memory_space<vmem>>, vector<16x8x16xf32>
    tpu.vector_store %arg8[%c8, %c0_10, %c0_11], %6 {strides = array<i32>} : memref<32x8x64xf32, #tpu.memory_space<vmem>>, vector<16x8x16xf32>,
    %cst_12 = arith.constant 0.000000e+00 : f32
    %8 = vector.broadcast %cst_12 : f32 to vector<128x64xf32>
    %c7 = arith.constant 7 : index
    %c0_13 = arith.constant 0 : index
    %c0_14 = arith.constant 0 : index
    %9 = vector.load %arg8[%c7, %c0_13, %c0_14] : memref<32x8x64xf32, #tpu.memory_space<vmem>>, vector<16x8x16xf32>
    %10 = vector.shape_cast %9 : vector<16x8x16xf32> to vector<128x16xf32>
    %11 = arith.truncf %10 : vector<128x16xf32> to vector<128x16xbf16>
    %c0_15 = arith.constant 0 : index
    %c0_16 = arith.constant 0 : index
    %c0_17 = arith.constant 0 : index
    %12 = vector.load %arg3[%c0_15, %c0_16, %c0_17] : memref<3x16x64xbf16, #tpu.memory_space<vmem>>, vector<1x16x64xbf16>
    %13 = vector.shape_cast %12 : vector<1x16x64xbf16> to vector<16x64xbf16>
    %cst_18 = arith.constant dense<0.000000e+00> : vector<128x64xf32>
    %14 = tpu.matmul %11, %13, %cst_18 {dimension_numbers = #tpu.dot_dimension_numbers<[1], [0], [0], [1], [0, 0, 1, 1], [], []>} : vector<128x16xbf16>, vector<16x64xbf16>, vector<128x64xf32> -> vector<128x64xf32>
    %15 = arith.addf %8, %14 : vector<128x64xf32>
    %c8_19 = arith.constant 8 : index
    %c0_20 = arith.constant 0 : index
    %c0_21 = arith.constant 0 : index
    %16 = vector.load %arg8[%c8_19, %c0_20, %c0_21] : memref<32x8x64xf32, #tpu.memory_space<vmem>>, vector<16x8x16xf32>
    %17 = vector.shape_cast %16 : vector<16x8x16xf32> to vector<128x16xf32>
    %18 = arith.truncf %17 : vector<128x16xf32> to vector<128x16xbf16>
    %c1 = arith.constant 1 : index
    %c0_22 = arith.constant 0 : index
    %c0_23 = arith.constant 0 : index
    %19 = vector.load %arg3[%c1, %c0_22, %c0_23] : memref<3x16x64xbf16, #tpu.memory_space<vmem>>, vector<1x16x64xbf16>
    %20 = vector.shape_cast %19 : vector<1x16x64xbf16> to vector<16x64xbf16>
    %cst_24 = arith.constant dense<0.000000e+00> : vector<128x64xf32>
    %21 = tpu.matmul %18, %20, %cst_24 {dimension_numbers = #tpu.dot_dimension_numbers<[1], [0], [0], [1], [0, 0, 1, 1], [], []>} : vector<128x16xbf16>, vector<16x64xbf16>, vector<128x64xf32> -> vector<128x64xf32>
    %22 = arith.addf %15, %21 : vector<128x64xf32>
    %c9 = arith.constant 9 : index
    %c0_25 = arith.constant 0 : index
    %c0_26 = arith.constant 0 : index
    %23 = vector.load %arg8[%c9, %c0_25, %c0_26] : memref<32x8x64xf32, #tpu.memory_space<vmem>>, vector<16x8x16xf32>
    %24 = vector.shape_cast %23 : vector<16x8x16xf32> to vector<128x16xf32>
    %25 = arith.truncf %24 : vector<128x16xf32> to vector<128x16xbf16>
    %c2 = arith.constant 2 : index
    %c0_27 = arith.constant 0 : index
    %c0_28 = arith.constant 0 : index
    %26 = vector.load %arg3[%c2, %c0_27, %c0_28] : memref<3x16x64xbf16, #tpu.memory_space<vmem>>, vector<1x16x64xbf16>
    %27 = vector.shape_cast %26 : vector<1x16x64xbf16> to vector<16x64xbf16>
    %cst_29 = arith.constant dense<0.000000e+00> : vector<128x64xf32>
    %28 = tpu.matmul %25, %27, %cst_29 {dimension_numbers = #tpu.dot_dimension_numbers<[1], [0], [0], [1], [0, 0, 1, 1], [], []>} : vector<128x16xbf16>, vector<16x64xbf16>, vector<128x64xf32> -> vector<128x64xf32>
    %29 = arith.addf %22, %28 : vector<128x64xf32>
    %c0_30 = arith.constant 0 : index
    %c0_31 = arith.constant 0 : index
    %30 = vector.load %arg4[%c0_30, %c0_31] : memref<1x64xf32, #tpu.memory_space<vmem>>, vector<1x64xf32>
    %31 = vector.broadcast %30 : vector<1x64xf32> to vector<128x64xf32>
    %32 = arith.addf %29, %31 : vector<128x64xf32>
    %cst_32 = arith.constant 0.000000e+00 : f32
    %33 = vector.broadcast %cst_32 : f32 to vector<128x64xf32>
    %34 = arith.maximumf %32, %33 : vector<128x64xf32>
    %35 = vector.shape_cast %34 : vector<128x64xf32> to vector<16x8x64xf32>
    %36 = vector.broadcast %0 : vector<16x8x1xf32> to vector<16x8x64xf32>
    %37 = arith.mulf %35, %36 : vector<16x8x64xf32>
    %c8_33 = arith.constant 8 : index
    %c0_34 = arith.constant 0 : index
    %c0_35 = arith.constant 0 : index
    %38 = vector.load %arg8[%c8_33, %c0_34, %c0_35] : memref<32x8x64xf32, #tpu.memory_space<vmem>>, vector<16x8x64xf32>
    tpu.vector_store %arg8[%c8_33, %c0_34, %c0_35], %37 {strides = array<i32>} : memref<32x8x64xf32, #tpu.memory_space<vmem>>, vector<16x8x64xf32>,
    %cst_36 = arith.constant 0.000000e+00 : f32
    %39 = vector.broadcast %cst_36 : f32 to vector<128x64xf32>
    %c7_37 = arith.constant 7 : index
    %c0_38 = arith.constant 0 : index
    %c0_39 = arith.constant 0 : index
    %40 = vector.load %arg8[%c7_37, %c0_38, %c0_39] : memref<32x8x64xf32, #tpu.memory_space<vmem>>, vector<16x8x64xf32>
    %41 = vector.shape_cast %40 : vector<16x8x64xf32> to vector<128x64xf32>
    %42 = arith.truncf %41 : vector<128x64xf32> to vector<128x64xbf16>
    %c0_40 = arith.constant 0 : index
    %c0_41 = arith.constant 0 : index
    %c0_42 = arith.constant 0 : index
    %43 = vector.load %arg5[%c0_40, %c0_41, %c0_42] : memref<3x64x64xbf16, #tpu.memory_space<vmem>>, vector<1x64x64xbf16>
    %44 = vector.shape_cast %43 : vector<1x64x64xbf16> to vector<64x64xbf16>
    %cst_43 = arith.constant dense<0.000000e+00> : vector<128x64xf32>
    %45 = tpu.matmul %42, %44, %cst_43 {dimension_numbers = #tpu.dot_dimension_numbers<[1], [0], [0], [1], [0, 0, 1, 1], [], []>} : vector<128x64xbf16>, vector<64x64xbf16>, vector<128x64xf32> -> vector<128x64xf32>
    %46 = arith.addf %39, %45 : vector<128x64xf32>
    %c8_44 = arith.constant 8 : index
    %c0_45 = arith.constant 0 : index
    %c0_46 = arith.constant 0 : index
    %47 = vector.load %arg8[%c8_44, %c0_45, %c0_46] : memref<32x8x64xf32, #tpu.memory_space<vmem>>, vector<16x8x64xf32>
    %48 = vector.shape_cast %47 : vector<16x8x64xf32> to vector<128x64xf32>
    %49 = arith.truncf %48 : vector<128x64xf32> to vector<128x64xbf16>
    %c1_47 = arith.constant 1 : index
    %c0_48 = arith.constant 0 : index
    %c0_49 = arith.constant 0 : index
    %50 = vector.load %arg5[%c1_47, %c0_48, %c0_49] : memref<3x64x64xbf16, #tpu.memory_space<vmem>>, vector<1x64x64xbf16>
    %51 = vector.shape_cast %50 : vector<1x64x64xbf16> to vector<64x64xbf16>
    %cst_50 = arith.constant dense<0.000000e+00> : vector<128x64xf32>
    %52 = tpu.matmul %49, %51, %cst_50 {dimension_numbers = #tpu.dot_dimension_numbers<[1], [0], [0], [1], [0, 0, 1, 1], [], []>} : vector<128x64xbf16>, vector<64x64xbf16>, vector<128x64xf32> -> vector<128x64xf32>
    %53 = arith.addf %46, %52 : vector<128x64xf32>
    %c9_51 = arith.constant 9 : index
    %c0_52 = arith.constant 0 : index
    %c0_53 = arith.constant 0 : index
    %54 = vector.load %arg8[%c9_51, %c0_52, %c0_53] : memref<32x8x64xf32, #tpu.memory_space<vmem>>, vector<16x8x64xf32>
    %55 = vector.shape_cast %54 : vector<16x8x64xf32> to vector<128x64xf32>
    %56 = arith.truncf %55 : vector<128x64xf32> to vector<128x64xbf16>
    %c2_54 = arith.constant 2 : index
    %c0_55 = arith.constant 0 : index
    %c0_56 = arith.constant 0 : index
    %57 = vector.load %arg5[%c2_54, %c0_55, %c0_56] : memref<3x64x64xbf16, #tpu.memory_space<vmem>>, vector<1x64x64xbf16>
    %58 = vector.shape_cast %57 : vector<1x64x64xbf16> to vector<64x64xbf16>
    %cst_57 = arith.constant dense<0.000000e+00> : vector<128x64xf32>
    %59 = tpu.matmul %56, %58, %cst_57 {dimension_numbers = #tpu.dot_dimension_numbers<[1], [0], [0], [1], [0, 0, 1, 1], [], []>} : vector<128x64xbf16>, vector<64x64xbf16>, vector<128x64xf32> -> vector<128x64xf32>
    %60 = arith.addf %53, %59 : vector<128x64xf32>
    %c0_58 = arith.constant 0 : index
    %c0_59 = arith.constant 0 : index
    %61 = vector.load %arg6[%c0_58, %c0_59] : memref<1x64xf32, #tpu.memory_space<vmem>>, vector<1x64xf32>
    %62 = vector.broadcast %61 : vector<1x64xf32> to vector<128x64xf32>
    %63 = arith.addf %60, %62 : vector<128x64xf32>
    %cst_60 = arith.constant 0.000000e+00 : f32
    %64 = vector.broadcast %cst_60 : f32 to vector<128x64xf32>
    %65 = arith.maximumf %63, %64 : vector<128x64xf32>
    %66 = vector.shape_cast %65 : vector<128x64xf32> to vector<16x8x64xf32>
    %67 = arith.truncf %66 : vector<16x8x64xf32> to vector<16x8x64xbf16>
    %c0_61 = arith.constant 0 : index
    %c0_62 = arith.constant 0 : index
    %c0_63 = arith.constant 0 : index
    %68 = vector.load %arg7[%c0_61, %c0_62, %c0_63] : memref<16x8x64xbf16, #tpu.memory_space<vmem>>, vector<16x8x64xbf16>
    tpu.vector_store %arg7[%c0_61, %c0_62, %c0_63], %67 {strides = array<i32>} : memref<16x8x64xbf16, #tpu.memory_space<vmem>>, vector<16x8x64xbf16>,
    return
  }
  func.func @transform_0(%arg0: i32) -> (i32, i32, i32) {
    %c0_i32 = arith.constant 0 : i32
    %c0_i32_0 = arith.constant 0 : i32
    %c0_i32_1 = arith.constant 0 : i32
    return %c0_i32, %arg0, %c0_i32_0 : i32, i32, i32
  }
  func.func @transform_1(%arg0: i32) -> (i32, i32, i32) {
    %c0_i32 = arith.constant 0 : i32
    %c0_i32_0 = arith.constant 0 : i32
    %c0_i32_1 = arith.constant 0 : i32
    return %c0_i32, %arg0, %c0_i32_0 : i32, i32, i32
  }
  func.func @transform_2(%arg0: i32) -> (i32, i32, i32) {
    %c0_i32 = arith.constant 0 : i32
    %c0_i32_0 = arith.constant 0 : i32
    %c0_i32_1 = arith.constant 0 : i32
    %c0_i32_2 = arith.constant 0 : i32
    return %c0_i32, %c0_i32_0, %c0_i32_1 : i32, i32, i32
  }
  func.func @transform_3(%arg0: i32) -> (i32, i32) {
    %c0_i32 = arith.constant 0 : i32
    %c0_i32_0 = arith.constant 0 : i32
    %c0_i32_1 = arith.constant 0 : i32
    return %c0_i32, %c0_i32_0 : i32, i32
  }
  func.func @transform_4(%arg0: i32) -> (i32, i32, i32) {
    %c0_i32 = arith.constant 0 : i32
    %c0_i32_0 = arith.constant 0 : i32
    %c0_i32_1 = arith.constant 0 : i32
    %c0_i32_2 = arith.constant 0 : i32
    return %c0_i32, %c0_i32_0, %c0_i32_1 : i32, i32, i32
  }
  func.func @transform_5(%arg0: i32) -> (i32, i32) {
    %c0_i32 = arith.constant 0 : i32
    %c0_i32_0 = arith.constant 0 : i32
    %c0_i32_1 = arith.constant 0 : i32
    return %c0_i32, %c0_i32_0 : i32, i32
  }
  func.func @transform_6(%arg0: i32) -> (i32, i32, i32) {
    %c0_i32 = arith.constant 0 : i32
    %c0_i32_0 = arith.constant 0 : i32
    %c0_i32_1 = arith.constant 0 : i32
    return %c0_i32, %arg0, %c0_i32_0 : i32, i32, i32
  }
}

</mosaic_0001>

<llo_original>
// kernel: tpu_custom_call.1
$region0: #{tpu_custom_call.1}
  #allocation0 [shape = 'u32[]', space=smem, size = 0x4, offset = 0x4, fixed_abs, tag = 'smem constant byte address 0x4 - core index']
  #allocation1 [shape = 'u32[144,128]{1,0:T(1,128)}', space=vmem, size = 0x12000, scoped, tag = 'internal scratch']
  #allocation2 [shape = 'f32[32,8,64]{2,1,0:T(8,128)}', space=vmem, size = 0x20000, scoped, tag = 'scratch operand']
  %s0 = inlined_call_operand.hbm [shape: f32[16,8,16], index: 0, kind: input, shape index: {}]
  %s1 = inlined_call_operand.hbm [shape: f32[16,8,1], index: 1, kind: input, shape index: {}]
  %s2 = inlined_call_operand.hbm [shape: bf16[3,16,64], index: 2, kind: input, shape index: {}]
  %s3 = inlined_call_operand.hbm [shape: f32[1,64], index: 3, kind: input, shape index: {}]
  %s4 = inlined_call_operand.hbm [shape: bf16[3,64,64], index: 4, kind: input, shape index: {}]
  %s5 = inlined_call_operand.hbm [shape: f32[1,64], index: 5, kind: input, shape index: {}]
  %s6 = inlined_call_operand.hbm [shape: bf16[16,8,64], index: 6, kind: output, shape index: {}]
  %s7 = sld [smem:[#allocation0]]
  $region58: #{tpu_custom_call.1} parent=0
    _
  %s9 = ssub.s32 1, %s7
  %s10 = scalar_select 0, %s9, %s7
  $region1: #{tpu_custom_call.1} parent=0
    #allocation3 [shape = 'u8[65536]{0}', space=vmem, size = 0x10000, scoped, tag = 'input window, operand 0, single buffered']
    #allocation4 [shape = 's32[1]{0}', space=sflag, size = 0x4, scoped, tag = 'scoped memory for tpu_custom_call.1']
    #allocation5 [shape = 's32[1]{0}', space=sflag, size = 0x4, scoped, tag = 'scoped memory for tpu_custom_call.1']
    #allocation6 [shape = 'u8[65536]{0}', space=vmem, size = 0x10000, scoped, tag = 'input window, operand 1, single buffered']
    #allocation7 [shape = 's32[1]{0}', space=sflag, size = 0x4, scoped, tag = 'scoped memory for tpu_custom_call.1']
    #allocation8 [shape = 'u8[12288]{0}', space=vmem, size = 0x3000, scoped, tag = 'input window, operand 2, single buffered']
    #allocation9 [shape = 'u8[512]{0}', space=vmem, size = 0x400, scoped, tag = 'input window, operand 3, single buffered']
    #allocation10 [shape = 's32[1]{0}', space=sflag, size = 0x4, scoped, tag = 'scoped memory for tpu_custom_call.1']
    #allocation11 [shape = 'u8[49152]{0}', space=vmem, size = 0xc000, scoped, tag = 'input window, operand 4, single buffered']
    #allocation12 [shape = 'u8[512]{0}', space=vmem, size = 0x400, scoped, tag = 'input window, operand 5, single buffered']
    #allocation13 [shape = 's32[1]{0}', space=sflag, size = 0x4, scoped, tag = 'scoped memory for tpu_custom_call.1']
    #allocation14 [shape = 'u8[32768]{0}', space=vmem, size = 0x8000, scoped, tag = 'output window, operand 0, single buffered']
    %11 = vsyncpa [#allocation4], 0
    %12 = vsyncpa [#allocation7], 0
    %13 = vsyncpa [#allocation10], 0
    %14 = vsyncpa [#allocation13], 0
    %15 = vsyncpa [#allocation5], 0
    // Predicated region
    $region2: #{tpu_custom_call.1} parent=1 // pred_check
      _
    $region3: #{tpu_custom_call.1} parent=1 // pred_check_branch
      %17 = sbr.rel (0) target = $region5
    $region4: #{tpu_custom_call.1} parent=1 // pred_region
      %s19 = ssub.s32 2048, 2048
      %20 = vsyncadd [#allocation4], %s19
      %s21 = sshll.u32 [#allocation3], 4
      %s22 = int_to_ptr.vmem [resolvable:$true] %s21
      %27 = dma.hbm_to_vmem [thread:$0]  %s0, 2048, %s22, [#allocation4], 128, 128, 8
    $region5: #{tpu_custom_call.1} parent=1 // pred_fallthru
      _
    // Predicated region
    $region6: #{tpu_custom_call.1} parent=1 // pred_check
      _
    $region7: #{tpu_custom_call.1} parent=1 // pred_check_branch
      %29 = sbr.rel (0) target = $region9
    $region8: #{tpu_custom_call.1} parent=1 // pred_region
      %s31 = ssub.s32 2048, 2048
      %32 = vsyncadd [#allocation7], %s31
      %s33 = sshll.u32 [#allocation6], 4
      %s34 = int_to_ptr.vmem [resolvable:$true] %s33
      %39 = dma.hbm_to_vmem [thread:$0]  %s1, 2048, %s34, [#allocation7], 128, 128, 8
    $region9: #{tpu_custom_call.1} parent=1 // pred_fallthru
      _
    // Predicated region
    $region10: #{tpu_custom_call.1} parent=1 // pred_check
      _
    $region11: #{tpu_custom_call.1} parent=1 // pred_check_branch
      %41 = sbr.rel (0) target = $region13
    $region12: #{tpu_custom_call.1} parent=1 // pred_region
      %s43 = ssub.s32 384, 384
      %44 = vsyncadd [#allocation7], %s43
      %s45 = sshll.u32 [#allocation8], 4
      %s46 = int_to_ptr.vmem [resolvable:$true] %s45
      %51 = dma.hbm_to_vmem [thread:$0]  %s2, 384, %s46, [#allocation7], 64, 64, 4
    $region13: #{tpu_custom_call.1} parent=1 // pred_fallthru
      _
    // Predicated region
    $region14: #{tpu_custom_call.1} parent=1 // pred_check
      _
    $region15: #{tpu_custom_call.1} parent=1 // pred_check_branch
      %53 = sbr.rel (0) target = $region17
    $region16: #{tpu_custom_call.1} parent=1 // pred_region
      %s55 = ssub.s32 16, 16
      %56 = vsyncadd [#allocation10], %s55
      %s58 = sshll.u32 [#allocation9], 4
      %s59 = int_to_ptr.vmem [resolvable:$true] %s58
      %61 = dma.hbm_to_vmem [thread:$0]  %s3, 16, %s59, [#allocation10]
    $region17: #{tpu_custom_call.1} parent=1 // pred_fallthru
      _
    // Predicated region
    $region18: #{tpu_custom_call.1} parent=1 // pred_check
      _
    $region19: #{tpu_custom_call.1} parent=1 // pred_check_branch
      %63 = sbr.rel (0) target = $region21
    $region20: #{tpu_custom_call.1} parent=1 // pred_region
      %s65 = ssub.s32 1536, 1536
      %66 = vsyncadd [#allocation10], %s65
      %s67 = sshll.u32 [#allocation11], 4
      %s68 = int_to_ptr.vmem [resolvable:$true] %s67
      %73 = dma.hbm_to_vmem [thread:$0]  %s4, 1536, %s68, [#allocation10], 64, 64, 4
    $region21: #{tpu_custom_call.1} parent=1 // pred_fallthru
      _
    // Predicated region
    $region22: #{tpu_custom_call.1} parent=1 // pred_check
      _
    $region23: #{tpu_custom_call.1} parent=1 // pred_check_branch
      %75 = sbr.rel (0) target = $region25
    $region24: #{tpu_custom_call.1} parent=1 // pred_region
      %s77 = ssub.s32 16, 16
      %78 = vsyncadd [#allocation13], %s77
      %s80 = sshll.u32 [#allocation12], 4
      %s81 = int_to_ptr.vmem [resolvable:$true] %s80
      %83 = dma.hbm_to_vmem [thread:$0]  %s5, 16, %s81, [#allocation13]
    $region25: #{tpu_custom_call.1} parent=1 // pred_fallthru
      _
    // Predicated region
    $region26: #{tpu_custom_call.1} parent=1 // pred_check
      _
    $region27: #{tpu_custom_call.1} parent=1 // pred_check_branch
      %85 = sbr.rel (0) target = $region29
    $region28: #{tpu_custom_call.1} parent=1 // pred_region
      %86 = dma.done [#allocation4], 2048
    $region29: #{tpu_custom_call.1} parent=1 // pred_fallthru
      _
    // Predicated region
    $region30: #{tpu_custom_call.1} parent=1 // pred_check
      _
    $region31: #{tpu_custom_call.1} parent=1 // pred_check_branch
      %88 = sbr.rel (0) target = $region33
    $region32: #{tpu_custom_call.1} parent=1 // pred_region
      %89 = dma.done [#allocation7], 2048
    $region33: #{tpu_custom_call.1} parent=1 // pred_fallthru
      _
    // Predicated region
    $region34: #{tpu_custom_call.1} parent=1 // pred_check
      _
    $region35: #{tpu_custom_call.1} parent=1 // pred_check_branch
      %91 = sbr.rel (0) target = $region37
    $region36: #{tpu_custom_call.1} parent=1 // pred_region
      %92 = dma.done [#allocation7], 384
    $region37: #{tpu_custom_call.1} parent=1 // pred_fallthru
      _
    // Predicated region
    $region38: #{tpu_custom_call.1} parent=1 // pred_check
      _
    $region39: #{tpu_custom_call.1} parent=1 // pred_check_branch
      %94 = sbr.rel (0) target = $region41
    $region40: #{tpu_custom_call.1} parent=1 // pred_region
      %95 = dma.done [#allocation10], 16
    $region41: #{tpu_custom_call.1} parent=1 // pred_fallthru
      _
    // Predicated region
    $region42: #{tpu_custom_call.1} parent=1 // pred_check
      _
    $region43: #{tpu_custom_call.1} parent=1 // pred_check_branch
      %97 = sbr.rel (0) target = $region45
    $region44: #{tpu_custom_call.1} parent=1 // pred_region
      %98 = dma.done [#allocation10], 1536
    $region45: #{tpu_custom_call.1} parent=1 // pred_fallthru
      _
    // Predicated region
    $region46: #{tpu_custom_call.1} parent=1 // pred_check
      _
    $region47: #{tpu_custom_call.1} parent=1 // pred_check_branch
      %100 = sbr.rel (0) target = $region49
    $region48: #{tpu_custom_call.1} parent=1 // pred_region
      %101 = dma.done [#allocation13], 16
    $region49: #{tpu_custom_call.1} parent=1 // pred_fallthru
      _
    %v103 = vld [vmem:[#allocation6] sm:$0xff]
    %v104 = vld [vmem:[#allocation6 + $0x8] sm:$0xff]
    %v105 = vld [vmem:[#allocation6 + $0x10] sm:$0xff]
    %v106 = vld [vmem:[#allocation6 + $0x18] sm:$0xff]
    %v107 = vld [vmem:[#allocation6 + $0x20] sm:$0xff]
    %v108 = vld [vmem:[#allocation6 + $0x28] sm:$0xff]
    %v109 = vld [vmem:[#allocation6 + $0x30] sm:$0xff]
    %v110 = vld [vmem:[#allocation6 + $0x38] sm:$0xff]
    %v111 = vld [vmem:[#allocation6 + $0x40] sm:$0xff]
    %v112 = vld [vmem:[#allocation6 + $0x48] sm:$0xff]
    %v113 = vld [vmem:[#allocation6 + $0x50] sm:$0xff]
    %v114 = vld [vmem:[#allocation6 + $0x58] sm:$0xff]
    %v115 = vld [vmem:[#allocation6 + $0x60] sm:$0xff]
    %v116 = vld [vmem:[#allocation6 + $0x68] sm:$0xff]
    %v117 = vld [vmem:[#allocation6 + $0x70] sm:$0xff]
    %v118 = vld [vmem:[#allocation6 + $0x78] sm:$0xff]
    %vm119 = vcmask 523264
    %120 = vst.msk [vmem:[#allocation2] sm:$0xff] %vm119, 0.0
    %121 = vst.msk [vmem:[#allocation2 + $0x8] sm:$0xff] %vm119, 0.0
    %122 = vst.msk [vmem:[#allocation2 + $0x10] sm:$0xff] %vm119, 0.0
    %123 = vst.msk [vmem:[#allocation2 + $0x18] sm:$0xff] %vm119, 0.0
    %124 = vst.msk [vmem:[#allocation2 + $0x20] sm:$0xff] %vm119, 0.0
    %125 = vst.msk [vmem:[#allocation2 + $0x28] sm:$0xff] %vm119, 0.0
    %126 = vst.msk [vmem:[#allocation2 + $0x30] sm:$0xff] %vm119, 0.0
    %127 = vst.msk [vmem:[#allocation2 + $0x38] sm:$0xff] %vm119, 0.0
    %s128 = scalar_lea.vmem [#allocation2], 192
    %129 = vst.msk [vmem:[%s128] sm:$0xff] %vm119, 0.0
    %130 = vst.msk [vmem:[%s128 + $0x8] sm:$0xff] %vm119, 0.0
    %131 = vst.msk [vmem:[%s128 + $0x10] sm:$0xff] %vm119, 0.0
    %132 = vst.msk [vmem:[%s128 + $0x18] sm:$0xff] %vm119, 0.0
    %133 = vst.msk [vmem:[%s128 + $0x20] sm:$0xff] %vm119, 0.0
    %134 = vst.msk [vmem:[%s128 + $0x28] sm:$0xff] %vm119, 0.0
    %135 = vst.msk [vmem:[%s128 + $0x30] sm:$0xff] %vm119, 0.0
    %136 = vst.msk [vmem:[%s128 + $0x38] sm:$0xff] %vm119, 0.0
    %v137 = vld [vmem:[#allocation3] sm:$0xff]
    %v138 = vld [vmem:[#allocation3 + $0x8] sm:$0xff]
    %v139 = vld [vmem:[#allocation3 + $0x10] sm:$0xff]
    %v140 = vld [vmem:[#allocation3 + $0x18] sm:$0xff]
    %v141 = vld [vmem:[#allocation3 + $0x20] sm:$0xff]
    %v142 = vld [vmem:[#allocation3 + $0x28] sm:$0xff]
    %v143 = vld [vmem:[#allocation3 + $0x30] sm:$0xff]
    %v144 = vld [vmem:[#allocation3 + $0x38] sm:$0xff]
    %v145 = vld [vmem:[#allocation3 + $0x40] sm:$0xff]
    %v146 = vld [vmem:[#allocation3 + $0x48] sm:$0xff]
    %v147 = vld [vmem:[#allocation3 + $0x50] sm:$0xff]
    %v148 = vld [vmem:[#allocation3 + $0x58] sm:$0xff]
    %v149 = vld [vmem:[#allocation3 + $0x60] sm:$0xff]
    %v150 = vld [vmem:[#allocation3 + $0x68] sm:$0xff]
    %v151 = vld [vmem:[#allocation3 + $0x70] sm:$0xff]
    %v152 = vld [vmem:[#allocation3 + $0x78] sm:$0xff]
    %154 = vset.pattern.permute.xlu0 0
    %155 = vperm.xlu0 %154, %v103
    %v156 = vpop.permute.xlu0 %155
    %159 = vset.pattern.permute.xlu0 0
    %160 = vperm.xlu0 %159, %v104
    %v161 = vpop.permute.xlu0 %160
    %164 = vset.pattern.permute.xlu0 0
    %165 = vperm.xlu0 %164, %v105
    %v166 = vpop.permute.xlu0 %165
    %169 = vset.pattern.permute.xlu0 0
    %170 = vperm.xlu0 %169, %v106
    %v171 = vpop.permute.xlu0 %170
    %174 = vset.pattern.permute.xlu0 0
    %175 = vperm.xlu0 %174, %v107
    %v176 = vpop.permute.xlu0 %175
    %179 = vset.pattern.permute.xlu0 0
    %180 = vperm.xlu0 %179, %v108
    %v181 = vpop.permute.xlu0 %180
    %184 = vset.pattern.permute.xlu0 0
    %185 = vperm.xlu0 %184, %v109
    %v186 = vpop.permute.xlu0 %185
    %189 = vset.pattern.permute.xlu0 0
    %190 = vperm.xlu0 %189, %v110
    %v191 = vpop.permute.xlu0 %190
    %194 = vset.pattern.permute.xlu0 0
    %195 = vperm.xlu0 %194, %v111
    %v196 = vpop.permute.xlu0 %195
    %199 = vset.pattern.permute.xlu0 0
    %200 = vperm.xlu0 %199, %v112
    %v201 = vpop.permute.xlu0 %200
    %204 = vset.pattern.permute.xlu0 0
    %205 = vperm.xlu0 %204, %v113
    %v206 = vpop.permute.xlu0 %205
    %209 = vset.pattern.permute.xlu0 0
    %210 = vperm.xlu0 %209, %v114
    %v211 = vpop.permute.xlu0 %210
    %214 = vset.pattern.permute.xlu0 0
    %215 = vperm.xlu0 %214, %v115
    %v216 = vpop.permute.xlu0 %215
    %219 = vset.pattern.permute.xlu0 0
    %220 = vperm.xlu0 %219, %v116
    %v221 = vpop.permute.xlu0 %220
    %224 = vset.pattern.permute.xlu0 0
    %225 = vperm.xlu0 %224, %v117
    %v226 = vpop.permute.xlu0 %225
    %229 = vset.pattern.permute.xlu0 0
    %230 = vperm.xlu0 %229, %v118
    %v231 = vpop.permute.xlu0 %230
    %v233 = vmul.f32 %v137, %v156
    %v234 = vmul.f32 %v138, %v161
    %v235 = vmul.f32 %v139, %v166
    %v236 = vmul.f32 %v140, %v171
    %v237 = vmul.f32 %v141, %v176
    %v238 = vmul.f32 %v142, %v181
    %v239 = vmul.f32 %v143, %v186
    %v240 = vmul.f32 %v144, %v191
    %v241 = vmul.f32 %v145, %v196
    %v242 = vmul.f32 %v146, %v201
    %v243 = vmul.f32 %v147, %v206
    %v244 = vmul.f32 %v148, %v211
    %v245 = vmul.f32 %v149, %v216
    %v246 = vmul.f32 %v150, %v221
    %v247 = vmul.f32 %v151, %v226
    %v248 = vmul.f32 %v152, %v231
    %s249 = scalar_lea.vmem [#allocation2], 64
    %vm250 = vcmask 130048
    %251 = vst.msk [vmem:[%s249] sm:$0xff] %vm250, %v233
    %252 = vst.msk [vmem:[%s249 + $0x8] sm:$0xff] %vm250, %v234
    %253 = vst.msk [vmem:[%s249 + $0x10] sm:$0xff] %vm250, %v235
    %254 = vst.msk [vmem:[%s249 + $0x18] sm:$0xff] %vm250, %v236
    %255 = vst.msk [vmem:[%s249 + $0x20] sm:$0xff] %vm250, %v237
    %256 = vst.msk [vmem:[%s249 + $0x28] sm:$0xff] %vm250, %v238
    %257 = vst.msk [vmem:[%s249 + $0x30] sm:$0xff] %vm250, %v239
    %258 = vst.msk [vmem:[%s249 + $0x38] sm:$0xff] %vm250, %v240
    %259 = vst.msk [vmem:[%s249 + $0x40] sm:$0xff] %vm250, %v241
    %260 = vst.msk [vmem:[%s249 + $0x48] sm:$0xff] %vm250, %v242
    %261 = vst.msk [vmem:[%s249 + $0x50] sm:$0xff] %vm250, %v243
    %262 = vst.msk [vmem:[%s249 + $0x58] sm:$0xff] %vm250, %v244
    %263 = vst.msk [vmem:[%s249 + $0x60] sm:$0xff] %vm250, %v245
    %264 = vst.msk [vmem:[%s249 + $0x68] sm:$0xff] %vm250, %v246
    %265 = vst.msk [vmem:[%s249 + $0x70] sm:$0xff] %vm250, %v247
    %266 = vst.msk [vmem:[%s249 + $0x78] sm:$0xff] %vm250, %v248
    %s267 = scalar_lea.vmem [#allocation2], 56
    %v268 = vld [vmem:[%s267] sm:$0xff]
    %v269 = vld [vmem:[%s267 + $0x8] sm:$0xff]
    %v270 = vld [vmem:[%s267 + $0x10] sm:$0xff]
    %v271 = vld [vmem:[%s267 + $0x18] sm:$0xff]
    %v272 = vld [vmem:[%s267 + $0x20] sm:$0xff]
    %v273 = vld [vmem:[%s267 + $0x28] sm:$0xff]
    %v274 = vld [vmem:[%s267 + $0x30] sm:$0xff]
    %v275 = vld [vmem:[%s267 + $0x38] sm:$0xff]
    %v276 = vld [vmem:[%s267 + $0x40] sm:$0xff]
    %v277 = vld [vmem:[%s267 + $0x48] sm:$0xff]
    %v278 = vld [vmem:[%s267 + $0x50] sm:$0xff]
    %v279 = vld [vmem:[%s267 + $0x58] sm:$0xff]
    %v280 = vld [vmem:[%s267 + $0x60] sm:$0xff]
    %v281 = vld [vmem:[%s267 + $0x68] sm:$0xff]
    %v282 = vld [vmem:[%s267 + $0x70] sm:$0xff]
    %v283 = vld [vmem:[%s267 + $0x78] sm:$0xff]
    %v284 = vpack.c.bf16 %v269, %v268
    %v285 = vpack.c.bf16 %v271, %v270
    %v286 = vpack.c.bf16 %v273, %v272
    %v287 = vpack.c.bf16 %v275, %v274
    %v288 = vpack.c.bf16 %v277, %v276
    %v289 = vpack.c.bf16 %v279, %v278
    %v290 = vpack.c.bf16 %v281, %v280
    %v291 = vpack.c.bf16 %v283, %v282
    %v292 = vld [vmem:[#allocation8] sm:$0xf]
    %v293 = vld [vmem:[#allocation8 + $0x4] sm:$0xf]
    %v294 = vld [vmem:[%s249] sm:$0xff]
    %v295 = vld [vmem:[%s249 + $0x8] sm:$0xff]
    %v296 = vld [vmem:[%s249 + $0x10] sm:$0xff]
    %v297 = vld [vmem:[%s249 + $0x18] sm:$0xff]
    %v298 = vld [vmem:[%s249 + $0x20] sm:$0xff]
    %v299 = vld [vmem:[%s249 + $0x28] sm:$0xff]
    %v300 = vld [vmem:[%s249 + $0x30] sm:$0xff]
    %v301 = vld [vmem:[%s249 + $0x38] sm:$0xff]
    %v302 = vld [vmem:[%s249 + $0x40] sm:$0xff]
    %v303 = vld [vmem:[%s249 + $0x48] sm:$0xff]
    %v304 = vld [vmem:[%s249 + $0x50] sm:$0xff]
    %v305 = vld [vmem:[%s249 + $0x58] sm:$0xff]
    %v306 = vld [vmem:[%s249 + $0x60] sm:$0xff]
    %v307 = vld [vmem:[%s249 + $0x68] sm:$0xff]
    %v308 = vld [vmem:[%s249 + $0x70] sm:$0xff]
    %v309 = vld [vmem:[%s249 + $0x78] sm:$0xff]
    %v310 = vpack.c.bf16 %v295, %v294
    %v311 = vpack.c.bf16 %v297, %v296
    %v312 = vpack.c.bf16 %v299, %v298
    %v313 = vpack.c.bf16 %v301, %v300
    %v314 = vpack.c.bf16 %v303, %v302
    %v315 = vpack.c.bf16 %v305, %v304
    %v316 = vpack.c.bf16 %v307, %v306
    %v317 = vpack.c.bf16 %v309, %v308
    %s318 = scalar_lea.vmem [#allocation8], 8
    %v319 = vld [vmem:[%s318] sm:$0xf]
    %v320 = vld [vmem:[%s318 + $0x4] sm:$0xf]
    %v323 = vunpack.c.l.b16 %v319
    %v324 = vunpack.c.l.b16 %v320
    %v325 = vpack.c.b16 %v324, %v323
    %v328 = vsel %vm250, %v310, 0
    %v331 = vsel %vm250, %v311, 0
    %v334 = vsel %vm250, %v312, 0
    %v337 = vsel %vm250, %v313, 0
    %v340 = vsel %vm250, %v314, 0
    %v343 = vsel %vm250, %v315, 0
    %v346 = vsel %vm250, %v316, 0
    %v349 = vsel %vm250, %v317, 0
    %351 = vmatprep.subr.bf16.mxu0 0
    %352 = vmatpush1.bf16.msra.mxu0 %v325
    %353 = vmatprep.subr.bf16.mxu0 0
    %354 = vmatpush1.bf16.msra.mxu0 0
    %355 = vmatprep.subr.bf16.mxu0 0
    %356 = vmatpush1.bf16.msra.mxu0 0
    %357 = vmatprep.subr.bf16.mxu0 0
    %358 = vmatpush1.bf16.msra.mxu0 0
    %359 = vmatprep.subr.bf16.mxu0 0
    %360 = vmatpush1.bf16.msra.mxu0 0
    %361 = vmatprep.subr.bf16.mxu0 0
    %362 = vmatpush1.bf16.msra.mxu0 0
    %363 = vmatprep.subr.bf16.mxu0 0
    %364 = vmatpush1.bf16.msra.mxu0 0
    %365 = vmatprep.subr.bf16.mxu0 0
    %366 = vmatpush1.bf16.msra.mxu0 0
    %367 = vmatprep.subr.bf16.mxu0 0
    %368 = vmatpush1.bf16.msra.mxu0 0
    %369 = vmatprep.subr.bf16.mxu0 0
    %370 = vmatpush1.bf16.msra.mxu0 0
    %371 = vmatprep.subr.bf16.mxu0 0
    %372 = vmatpush1.bf16.msra.mxu0 0
    %373 = vmatprep.subr.bf16.mxu0 0
    %374 = vmatpush1.bf16.msra.mxu0 0
    %375 = vmatprep.subr.bf16.mxu0 0
    %376 = vmatpush1.bf16.msra.mxu0 0
    %377 = vmatprep.subr.bf16.mxu0 0
    %378 = vmatpush1.bf16.msra.mxu0 0
    %379 = vmatprep.subr.bf16.mxu0 0
    %380 = vmatpush1.bf16.msra.mxu0 0
    %381 = vmatprep.subr.bf16.mxu0 0
    %382 = vmatpush1.bf16.msra.mxu0 0
    %383 = vmatprep.mubr.bf16.mxu0 0
    %384 = vmatmul.mubr.bf16.gmra.mrb[0].mxu0 %v328
    %v385 = vpop.f32.mrb[0].mxu0
    %v386 = vadd.f32 0.0, %v385
    %v387 = vpop.f32.mrb[0].mxu0
    %v388 = vpop.f32.mrb[0].mxu0
    %v389 = vadd.f32 0.0, %v388
    %v390 = vpop.f32.mrb[0].mxu0
    %391 = vmatprep.mubr.bf16.mxu0 0
    %392 = vmatmul.mubr.bf16.gmra.mrb[0].mxu0 %v331
    %v393 = vpop.f32.mrb[0].mxu0
    %v394 = vadd.f32 0.0, %v393
    %v395 = vpop.f32.mrb[0].mxu0
    %v396 = vpop.f32.mrb[0].mxu0
    %v397 = vadd.f32 0.0, %v396
    %v398 = vpop.f32.mrb[0].mxu0
    %399 = vmatprep.mubr.bf16.mxu0 0
    %400 = vmatmul.mubr.bf16.gmra.mrb[0].mxu0 %v334
    %v401 = vpop.f32.mrb[0].mxu0
    %v402 = vadd.f32 0.0, %v401
    %v403 = vpop.f32.mrb[0].mxu0
    %v404 = vpop.f32.mrb[0].mxu0
    %v405 = vadd.f32 0.0, %v404
    %v406 = vpop.f32.mrb[0].mxu0
    %407 = vmatprep.mubr.bf16.mxu0 0
    %408 = vmatmul.mubr.bf16.gmra.mrb[0].mxu0 %v337
    %v409 = vpop.f32.mrb[0].mxu0
    %v410 = vadd.f32 0.0, %v409
    %v411 = vpop.f32.mrb[0].mxu0
    %v412 = vpop.f32.mrb[0].mxu0
    %v413 = vadd.f32 0.0, %v412
    %v414 = vpop.f32.mrb[0].mxu0
    %415 = vmatprep.mubr.bf16.mxu0 0
    %416 = vmatmul.mubr.bf16.gmra.mrb[0].mxu0 %v340
    %v417 = vpop.f32.mrb[0].mxu0
    %v418 = vadd.f32 0.0, %v417
    %v419 = vpop.f32.mrb[0].mxu0
    %v420 = vpop.f32.mrb[0].mxu0
    %v421 = vadd.f32 0.0, %v420
    %v422 = vpop.f32.mrb[0].mxu0
    %423 = vmatprep.mubr.bf16.mxu0 0
    %424 = vmatmul.mubr.bf16.gmra.mrb[0].mxu0 %v343
    %v425 = vpop.f32.mrb[0].mxu0
    %v426 = vadd.f32 0.0, %v425
    %v427 = vpop.f32.mrb[0].mxu0
    %v428 = vpop.f32.mrb[0].mxu0
    %v429 = vadd.f32 0.0, %v428
    %v430 = vpop.f32.mrb[0].mxu0
    %431 = vmatprep.mubr.bf16.mxu0 0
    %432 = vmatmul.mubr.bf16.gmra.mrb[0].mxu0 %v346
    %v433 = vpop.f32.mrb[0].mxu0
    %v434 = vadd.f32 0.0, %v433
    %v435 = vpop.f32.mrb[0].mxu0
    %v436 = vpop.f32.mrb[0].mxu0
    %v437 = vadd.f32 0.0, %v436
    %v438 = vpop.f32.mrb[0].mxu0
    %439 = vmatprep.mubr.bf16.mxu0 0
    %440 = vmatmul.mubr.bf16.gmra.mrb[0].mxu0 %v349
    %v441 = vpop.f32.mrb[0].mxu0
    %v442 = vadd.f32 0.0, %v441
    %v443 = vpop.f32.mrb[0].mxu0
    %v444 = vpop.f32.mrb[0].mxu0
    %v445 = vadd.f32 0.0, %v444
    %v446 = vpop.f32.mrb[0].mxu0
    %447 = vdwg.mxu0
    %v450 = vunpack.c.l.b16 %v292
    %v451 = vunpack.c.l.b16 %v293
    %v452 = vpack.c.b16 %v451, %v450
    %v455 = vsel %vm250, %v284, 0
    %v458 = vsel %vm250, %v285, 0
    %v461 = vsel %vm250, %v286, 0
    %v464 = vsel %vm250, %v287, 0
    %v467 = vsel %vm250, %v288, 0
    %v470 = vsel %vm250, %v289, 0
    %v473 = vsel %vm250, %v290, 0
    %v476 = vsel %vm250, %v291, 0
    %478 = vmatprep.subr.bf16.mxu0 0
    %479 = vmatpush1.bf16.msra.mxu0 %v452
    %480 = vmatprep.subr.bf16.mxu0 0
    %481 = vmatpush1.bf16.msra.mxu0 0
    %482 = vmatprep.subr.bf16.mxu0 0
    %483 = vmatpush1.bf16.msra.mxu0 0
    %484 = vmatprep.subr.bf16.mxu0 0
    %485 = vmatpush1.bf16.msra.mxu0 0
    %486 = vmatprep.subr.bf16.mxu0 0
    %487 = vmatpush1.bf16.msra.mxu0 0
    %488 = vmatprep.subr.bf16.mxu0 0
    %489 = vmatpush1.bf16.msra.mxu0 0
    %490 = vmatprep.subr.bf16.mxu0 0
    %491 = vmatpush1.bf16.msra.mxu0 0
    %492 = vmatprep.subr.bf16.mxu0 0
    %493 = vmatpush1.bf16.msra.mxu0 0
    %494 = vmatprep.subr.bf16.mxu0 0
    %495 = vmatpush1.bf16.msra.mxu0 0
    %496 = vmatprep.subr.bf16.mxu0 0
    %497 = vmatpush1.bf16.msra.mxu0 0
    %498 = vmatprep.subr.bf16.mxu0 0
    %499 = vmatpush1.bf16.msra.mxu0 0
    %500 = vmatprep.subr.bf16.mxu0 0
    %501 = vmatpush1.bf16.msra.mxu0 0
    %502 = vmatprep.subr.bf16.mxu0 0
    %503 = vmatpush1.bf16.msra.mxu0 0
    %504 = vmatprep.subr.bf16.mxu0 0
    %505 = vmatpush1.bf16.msra.mxu0 0
    %506 = vmatprep.subr.bf16.mxu0 0
    %507 = vmatpush1.bf16.msra.mxu0 0
    %508 = vmatprep.subr.bf16.mxu0 0
    %509 = vmatpush1.bf16.msra.mxu0 0
    %510 = vmatprep.mubr.bf16.mxu0 0
    %511 = vmatmul.mubr.bf16.gmra.mrb[0].mxu0 %v455
    %v512 = vpop.f32.mrb[0].mxu0
    %v513 = vadd.f32 %v386, %v512
    %v514 = vpop.f32.mrb[0].mxu0
    %v515 = vpop.f32.mrb[0].mxu0
    %v516 = vadd.f32 %v389, %v515
    %v517 = vpop.f32.mrb[0].mxu0
    %518 = vmatprep.mubr.bf16.mxu0 0
    %519 = vmatmul.mubr.bf16.gmra.mrb[0].mxu0 %v458
    %v520 = vpop.f32.mrb[0].mxu0
    %v521 = vadd.f32 %v394, %v520
    %v522 = vpop.f32.mrb[0].mxu0
    %v523 = vpop.f32.mrb[0].mxu0
    %v524 = vadd.f32 %v397, %v523
    %v525 = vpop.f32.mrb[0].mxu0
    %526 = vmatprep.mubr.bf16.mxu0 0
    %527 = vmatmul.mubr.bf16.gmra.mrb[0].mxu0 %v461
    %v528 = vpop.f32.mrb[0].mxu0
    %v529 = vadd.f32 %v402, %v528
    %v530 = vpop.f32.mrb[0].mxu0
    %v531 = vpop.f32.mrb[0].mxu0
    %v532 = vadd.f32 %v405, %v531
    %v533 = vpop.f32.mrb[0].mxu0
    %534 = vmatprep.mubr.bf16.mxu0 0
    %535 = vmatmul.mubr.bf16.gmra.mrb[0].mxu0 %v464
    %v536 = vpop.f32.mrb[0].mxu0
    %v537 = vadd.f32 %v410, %v536
    %v538 = vpop.f32.mrb[0].mxu0
    %v539 = vpop.f32.mrb[0].mxu0
    %v540 = vadd.f32 %v413, %v539
    %v541 = vpop.f32.mrb[0].mxu0
    %542 = vmatprep.mubr.bf16.mxu0 0
    %543 = vmatmul.mubr.bf16.gmra.mrb[0].mxu0 %v467
    %v544 = vpop.f32.mrb[0].mxu0
    %v545 = vadd.f32 %v418, %v544
    %v546 = vpop.f32.mrb[0].mxu0
    %v547 = vpop.f32.mrb[0].mxu0
    %v548 = vadd.f32 %v421, %v547
    %v549 = vpop.f32.mrb[0].mxu0
    %550 = vmatprep.mubr.bf16.mxu0 0
    %551 = vmatmul.mubr.bf16.gmra.mrb[0].mxu0 %v470
    %v552 = vpop.f32.mrb[0].mxu0
    %v553 = vadd.f32 %v426, %v552
    %v554 = vpop.f32.mrb[0].mxu0
    %v555 = vpop.f32.mrb[0].mxu0
    %v556 = vadd.f32 %v429, %v555
    %v557 = vpop.f32.mrb[0].mxu0
    %558 = vmatprep.mubr.bf16.mxu0 0
    %559 = vmatmul.mubr.bf16.gmra.mrb[0].mxu0 %v473
    %v560 = vpop.f32.mrb[0].mxu0
    %v561 = vadd.f32 %v434, %v560
    %v562 = vpop.f32.mrb[0].mxu0
    %v563 = vpop.f32.mrb[0].mxu0
    %v564 = vadd.f32 %v437, %v563
    %v565 = vpop.f32.mrb[0].mxu0
    %566 = vmatprep.mubr.bf16.mxu0 0
    %567 = vmatmul.mubr.bf16.gmra.mrb[0].mxu0 %v476
    %v568 = vpop.f32.mrb[0].mxu0
    %v569 = vadd.f32 %v442, %v568
    %v570 = vpop.f32.mrb[0].mxu0
    %v571 = vpop.f32.mrb[0].mxu0
    %v572 = vadd.f32 %v445, %v571
    %v573 = vpop.f32.mrb[0].mxu0
    %574 = vdwg.mxu0
    %s575 = scalar_lea.vmem [#allocation2], 72
    %v576 = vld [vmem:[%s575] sm:$0xff]
    %v577 = vld [vmem:[%s575 + $0x8] sm:$0xff]
    %v578 = vld [vmem:[%s575 + $0x10] sm:$0xff]
    %v579 = vld [vmem:[%s575 + $0x18] sm:$0xff]
    %v580 = vld [vmem:[%s575 + $0x20] sm:$0xff]
    %v581 = vld [vmem:[%s575 + $0x28] sm:$0xff]
    %v582 = vld [vmem:[%s575 + $0x30] sm:$0xff]
    %v583 = vld [vmem:[%s575 + $0x38] sm:$0xff]
    %v584 = vld [vmem:[%s575 + $0x40] sm:$0xff]
    %v585 = vld [vmem:[%s575 + $0x48] sm:$0xff]
    %v586 = vld [vmem:[%s575 + $0x50] sm:$0xff]
    %v587 = vld [vmem:[%s575 + $0x58] sm:$0xff]
    %v588 = vld [vmem:[%s575 + $0x60] sm:$0xff]
    %v589 = vld [vmem:[%s575 + $0x68] sm:$0xff]
    %v590 = vld [vmem:[%s575 + $0x70] sm:$0xff]
    %v591 = vld [vmem:[%s575 + $0x78] sm:$0xff]
    %v592 = vpack.c.bf16 %v577, %v576
    %v593 = vpack.c.bf16 %v579, %v578
    %v594 = vpack.c.bf16 %v581, %v580
    %v595 = vpack.c.bf16 %v583, %v582
    %v596 = vpack.c.bf16 %v585, %v584
    %v597 = vpack.c.bf16 %v587, %v586
    %v598 = vpack.c.bf16 %v589, %v588
    %v599 = vpack.c.bf16 %v591, %v590
    %s600 = scalar_lea.vmem [#allocation8], 16
    %v601 = vld [vmem:[%s600] sm:$0xf]
    %v602 = vld [vmem:[%s600 + $0x4] sm:$0xf]
    %v605 = vunpack.c.l.b16 %v601
    %v606 = vunpack.c.l.b16 %v602
    %v607 = vpack.c.b16 %v606, %v605
    %v610 = vsel %vm250, %v592, 0
    %v613 = vsel %vm250, %v593, 0
    %v616 = vsel %vm250, %v594, 0
    %v619 = vsel %vm250, %v595, 0
    %v622 = vsel %vm250, %v596, 0
    %v625 = vsel %vm250, %v597, 0
    %v628 = vsel %vm250, %v598, 0
    %v631 = vsel %vm250, %v599, 0
    %633 = vmatprep.subr.bf16.mxu0 0
    %634 = vmatpush1.bf16.msra.mxu0 %v607
    %635 = vmatprep.subr.bf16.mxu0 0
    %636 = vmatpush1.bf16.msra.mxu0 0
    %637 = vmatprep.subr.bf16.mxu0 0
    %638 = vmatpush1.bf16.msra.mxu0 0
    %639 = vmatprep.subr.bf16.mxu0 0
    %640 = vmatpush1.bf16.msra.mxu0 0
    %641 = vmatprep.subr.bf16.mxu0 0
    %642 = vmatpush1.bf16.msra.mxu0 0
    %643 = vmatprep.subr.bf16.mxu0 0
    %644 = vmatpush1.bf16.msra.mxu0 0
    %645 = vmatprep.subr.bf16.mxu0 0
    %646 = vmatpush1.bf16.msra.mxu0 0
    %647 = vmatprep.subr.bf16.mxu0 0
    %648 = vmatpush1.bf16.msra.mxu0 0
    %649 = vmatprep.subr.bf16.mxu0 0
    %650 = vmatpush1.bf16.msra.mxu0 0
    %651 = vmatprep.subr.bf16.mxu0 0
    %652 = vmatpush1.bf16.msra.mxu0 0
    %653 = vmatprep.subr.bf16.mxu0 0
    %654 = vmatpush1.bf16.msra.mxu0 0
    %655 = vmatprep.subr.bf16.mxu0 0
    %656 = vmatpush1.bf16.msra.mxu0 0
    %657 = vmatprep.subr.bf16.mxu0 0
    %658 = vmatpush1.bf16.msra.mxu0 0
    %659 = vmatprep.subr.bf16.mxu0 0
    %660 = vmatpush1.bf16.msra.mxu0 0
    %661 = vmatprep.subr.bf16.mxu0 0
    %662 = vmatpush1.bf16.msra.mxu0 0
    %663 = vmatprep.subr.bf16.mxu0 0
    %664 = vmatpush1.bf16.msra.mxu0 0
    %665 = vmatprep.mubr.bf16.mxu0 0
    %666 = vmatmul.mubr.bf16.gmra.mrb[0].mxu0 %v610
    %v667 = vpop.f32.mrb[0].mxu0
    %v668 = vadd.f32 0.0, %v667
    %v669 = vpop.f32.mrb[0].mxu0
    %v670 = vpop.f32.mrb[0].mxu0
    %v671 = vadd.f32 0.0, %v670
    %v672 = vpop.f32.mrb[0].mxu0
    %673 = vmatprep.mubr.bf16.mxu0 0
    %674 = vmatmul.mubr.bf16.gmra.mrb[0].mxu0 %v613
    %v675 = vpop.f32.mrb[0].mxu0
    %v676 = vadd.f32 0.0, %v675
    %v677 = vpop.f32.mrb[0].mxu0
    %v678 = vpop.f32.mrb[0].mxu0
    %v679 = vadd.f32 0.0, %v678
    %v680 = vpop.f32.mrb[0].mxu0
    %681 = vmatprep.mubr.bf16.mxu0 0
    %682 = vmatmul.mubr.bf16.gmra.mrb[0].mxu0 %v616
    %v683 = vpop.f32.mrb[0].mxu0
    %v684 = vadd.f32 0.0, %v683
    %v685 = vpop.f32.mrb[0].mxu0
    %v686 = vpop.f32.mrb[0].mxu0
    %v687 = vadd.f32 0.0, %v686
    %v688 = vpop.f32.mrb[0].mxu0
    %689 = vmatprep.mubr.bf16.mxu0 0
    %690 = vmatmul.mubr.bf16.gmra.mrb[0].mxu0 %v619
    %v691 = vpop.f32.mrb[0].mxu0
    %v692 = vadd.f32 0.0, %v691
    %v693 = vpop.f32.mrb[0].mxu0
    %v694 = vpop.f32.mrb[0].mxu0
    %v695 = vadd.f32 0.0, %v694
    %v696 = vpop.f32.mrb[0].mxu0
    %697 = vmatprep.mubr.bf16.mxu0 0
    %698 = vmatmul.mubr.bf16.gmra.mrb[0].mxu0 %v622
    %v699 = vpop.f32.mrb[0].mxu0
    %v700 = vadd.f32 0.0, %v699
    %v701 = vpop.f32.mrb[0].mxu0
    %v702 = vpop.f32.mrb[0].mxu0
    %v703 = vadd.f32 0.0, %v702
    %v704 = vpop.f32.mrb[0].mxu0
    %705 = vmatprep.mubr.bf16.mxu0 0
    %706 = vmatmul.mubr.bf16.gmra.mrb[0].mxu0 %v625
    %v707 = vpop.f32.mrb[0].mxu0
    %v708 = vadd.f32 0.0, %v707
    %v709 = vpop.f32.mrb[0].mxu0
    %v710 = vpop.f32.mrb[0].mxu0
    %v711 = vadd.f32 0.0, %v710
    %v712 = vpop.f32.mrb[0].mxu0
    %713 = vmatprep.mubr.bf16.mxu0 0
    %714 = vmatmul.mubr.bf16.gmra.mrb[0].mxu0 %v628
    %v715 = vpop.f32.mrb[0].mxu0
    %v716 = vadd.f32 0.0, %v715
    %v717 = vpop.f32.mrb[0].mxu0
    %v718 = vpop.f32.mrb[0].mxu0
    %v719 = vadd.f32 0.0, %v718
    %v720 = vpop.f32.mrb[0].mxu0
    %721 = vmatprep.mubr.bf16.mxu0 0
    %722 = vmatmul.mubr.bf16.gmra.mrb[0].mxu0 %v631
    %v723 = vpop.f32.mrb[0].mxu0
    %v724 = vadd.f32 0.0, %v723
    %v725 = vpop.f32.mrb[0].mxu0
    %v726 = vpop.f32.mrb[0].mxu0
    %v727 = vadd.f32 0.0, %v726
    %v728 = vpop.f32.mrb[0].mxu0
    %729 = vdwg.mxu0
    %v730 = vadd.f32 %v513, %v668
    %v731 = vadd.f32 %v516, %v671
    %v732 = vadd.f32 %v521, %v676
    %v733 = vadd.f32 %v524, %v679
    %v734 = vadd.f32 %v529, %v684
    %v735 = vadd.f32 %v532, %v687
    %v736 = vadd.f32 %v537, %v692
    %v737 = vadd.f32 %v540, %v695
    %v738 = vadd.f32 %v545, %v700
    %v739 = vadd.f32 %v548, %v703
    %v740 = vadd.f32 %v553, %v708
    %v741 = vadd.f32 %v556, %v711
    %v742 = vadd.f32 %v561, %v716
    %v743 = vadd.f32 %v564, %v719
    %v744 = vadd.f32 %v569, %v724
    %v745 = vadd.f32 %v572, %v727
    %v746 = vld [vmem:[#allocation9] sm:$0x1]
    %v748 = vlaneseq
    %v749 = vshrl.u32 %v748, 7
    %v750 = vsub.s32 0, %v749
    %v751 = vrot.slane %v746, %v750
    %v753 = vadd.f32 %v730, %v751
    %v754 = vadd.f32 %v731, %v751
    %v755 = vadd.f32 %v732, %v751
    %v756 = vadd.f32 %v733, %v751
    %v757 = vadd.f32 %v734, %v751
    %v758 = vadd.f32 %v735, %v751
    %v759 = vadd.f32 %v736, %v751
    %v760 = vadd.f32 %v737, %v751
    %v761 = vadd.f32 %v738, %v751
    %v762 = vadd.f32 %v739, %v751
    %v763 = vadd.f32 %v740, %v751
    %v764 = vadd.f32 %v741, %v751
    %v765 = vadd.f32 %v742, %v751
    %v766 = vadd.f32 %v743, %v751
    %v767 = vadd.f32 %v744, %v751
    %v768 = vadd.f32 %v745, %v751
    %v769 = vmax.f32 %v753, 0.0
    %v770 = vmax.f32 %v754, 0.0
    %v771 = vmax.f32 %v755, 0.0
    %v772 = vmax.f32 %v756, 0.0
    %v773 = vmax.f32 %v757, 0.0
    %v774 = vmax.f32 %v758, 0.0
    %v775 = vmax.f32 %v759, 0.0
    %v776 = vmax.f32 %v760, 0.0
    %v777 = vmax.f32 %v761, 0.0
    %v778 = vmax.f32 %v762, 0.0
    %v779 = vmax.f32 %v763, 0.0
    %v780 = vmax.f32 %v764, 0.0
    %v781 = vmax.f32 %v765, 0.0
    %v782 = vmax.f32 %v766, 0.0
    %v783 = vmax.f32 %v767, 0.0
    %v784 = vmax.f32 %v768, 0.0
    %v785 = vmul.f32 %v769, %v156
    %v786 = vmul.f32 %v770, %v161
    %v787 = vmul.f32 %v771, %v166
    %v788 = vmul.f32 %v772, %v171
    %v789 = vmul.f32 %v773, %v176
    %v790 = vmul.f32 %v774, %v181
    %v791 = vmul.f32 %v775, %v186
    %v792 = vmul.f32 %v776, %v191
    %v793 = vmul.f32 %v777, %v196
    %v794 = vmul.f32 %v778, %v201
    %v795 = vmul.f32 %v779, %v206
    %v796 = vmul.f32 %v780, %v211
    %v797 = vmul.f32 %v781, %v216
    %v798 = vmul.f32 %v782, %v221
    %v799 = vmul.f32 %v783, %v226
    %v800 = vmul.f32 %v784, %v231
    %801 = vst.msk [vmem:[%s249] sm:$0xff] %vm119, %v785
    %802 = vst.msk [vmem:[%s249 + $0x8] sm:$0xff] %vm119, %v786
    %803 = vst.msk [vmem:[%s249 + $0x10] sm:$0xff] %vm119, %v787
    %804 = vst.msk [vmem:[%s249 + $0x18] sm:$0xff] %vm119, %v788
    %805 = vst.msk [vmem:[%s249 + $0x20] sm:$0xff] %vm119, %v789
    %806 = vst.msk [vmem:[%s249 + $0x28] sm:$0xff] %vm119, %v790
    %807 = vst.msk [vmem:[%s249 + $0x30] sm:$0xff] %vm119, %v791
    %808 = vst.msk [vmem:[%s249 + $0x38] sm:$0xff] %vm119, %v792
    %809 = vst.msk [vmem:[%s249 + $0x40] sm:$0xff] %vm119, %v793
    %810 = vst.msk [vmem:[%s249 + $0x48] sm:$0xff] %vm119, %v794
    %811 = vst.msk [vmem:[%s249 + $0x50] sm:$0xff] %vm119, %v795
    %812 = vst.msk [vmem:[%s249 + $0x58] sm:$0xff] %vm119, %v796
    %813 = vst.msk [vmem:[%s249 + $0x60] sm:$0xff] %vm119, %v797
    %814 = vst.msk [vmem:[%s249 + $0x68] sm:$0xff] %vm119, %v798
    %815 = vst.msk [vmem:[%s249 + $0x70] sm:$0xff] %vm119, %v799
    %816 = vst.msk [vmem:[%s249 + $0x78] sm:$0xff] %vm119, %v800
    %v817 = vld [vmem:[%s267] sm:$0xff]
    %v818 = vld [vmem:[%s267 + $0x8] sm:$0xff]
    %v819 = vld [vmem:[%s267 + $0x10] sm:$0xff]
    %v820 = vld [vmem:[%s267 + $0x18] sm:$0xff]
    %v821 = vld [vmem:[%s267 + $0x20] sm:$0xff]
    %v822 = vld [vmem:[%s267 + $0x28] sm:$0xff]
    %v823 = vld [vmem:[%s267 + $0x30] sm:$0xff]
    %v824 = vld [vmem:[%s267 + $0x38] sm:$0xff]
    %v825 = vld [vmem:[%s267 + $0x40] sm:$0xff]
    %v826 = vld [vmem:[%s267 + $0x48] sm:$0xff]
    %v827 = vld [vmem:[%s267 + $0x50] sm:$0xff]
    %v828 = vld [vmem:[%s267 + $0x58] sm:$0xff]
    %v829 = vld [vmem:[%s267 + $0x60] sm:$0xff]
    %v830 = vld [vmem:[%s267 + $0x68] sm:$0xff]
    %v831 = vld [vmem:[%s267 + $0x70] sm:$0xff]
    %v832 = vld [vmem:[%s267 + $0x78] sm:$0xff]
    %v833 = vpack.c.bf16 %v818, %v817
    %v834 = vpack.c.bf16 %v820, %v819
    %v835 = vpack.c.bf16 %v822, %v821
    %v836 = vpack.c.bf16 %v824, %v823
    %v837 = vpack.c.bf16 %v826, %v825
    %v838 = vpack.c.bf16 %v828, %v827
    %v839 = vpack.c.bf16 %v830, %v829
    %v840 = vpack.c.bf16 %v832, %v831
    %v841 = vld [vmem:[#allocation11] sm:$0xf]
    %v842 = vld [vmem:[#allocation11 + $0x4] sm:$0xf]
    %v843 = vld [vmem:[#allocation11 + $0x8] sm:$0xf]
    %v844 = vld [vmem:[#allocation11 + $0xc] sm:$0xf]
    %v845 = vld [vmem:[#allocation11 + $0x10] sm:$0xf]
    %v846 = vld [vmem:[#allocation11 + $0x14] sm:$0xf]
    %v847 = vld [vmem:[#allocation11 + $0x18] sm:$0xf]
    %v848 = vld [vmem:[#allocation11 + $0x1c] sm:$0xf]
    %v849 = vld [vmem:[%s249] sm:$0xff]
    %v850 = vld [vmem:[%s249 + $0x8] sm:$0xff]
    %v851 = vld [vmem:[%s249 + $0x10] sm:$0xff]
    %v852 = vld [vmem:[%s249 + $0x18] sm:$0xff]
    %v853 = vld [vmem:[%s249 + $0x20] sm:$0xff]
    %v854 = vld [vmem:[%s249 + $0x28] sm:$0xff]
    %v855 = vld [vmem:[%s249 + $0x30] sm:$0xff]
    %v856 = vld [vmem:[%s249 + $0x38] sm:$0xff]
    %v857 = vld [vmem:[%s249 + $0x40] sm:$0xff]
    %v858 = vld [vmem:[%s249 + $0x48] sm:$0xff]
    %v859 = vld [vmem:[%s249 + $0x50] sm:$0xff]
    %v860 = vld [vmem:[%s249 + $0x58] sm:$0xff]
    %v861 = vld [vmem:[%s249 + $0x60] sm:$0xff]
    %v862 = vld [vmem:[%s249 + $0x68] sm:$0xff]
    %v863 = vld [vmem:[%s249 + $0x70] sm:$0xff]
    %v864 = vld [vmem:[%s249 + $0x78] sm:$0xff]
    %v865 = vpack.c.bf16 %v850, %v849
    %v866 = vpack.c.bf16 %v852, %v851
    %v867 = vpack.c.bf16 %v854, %v853
    %v868 = vpack.c.bf16 %v856, %v855
    %v869 = vpack.c.bf16 %v858, %v857
    %v870 = vpack.c.bf16 %v860, %v859
    %v871 = vpack.c.bf16 %v862, %v861
    %v872 = vpack.c.bf16 %v864, %v863
    %s873 = scalar_lea.vmem [#allocation11], 32
    %v874 = vld [vmem:[%s873] sm:$0xf]
    %v875 = vld [vmem:[%s873 + $0x4] sm:$0xf]
    %v876 = vld [vmem:[%s873 + $0x8] sm:$0xf]
    %v877 = vld [vmem:[%s873 + $0xc] sm:$0xf]
    %v878 = vld [vmem:[%s873 + $0x10] sm:$0xf]
    %v879 = vld [vmem:[%s873 + $0x14] sm:$0xf]
    %v880 = vld [vmem:[%s873 + $0x18] sm:$0xf]
    %v881 = vld [vmem:[%s873 + $0x1c] sm:$0xf]
    %v890 = vunpack.c.l.b16 %v874
    %v891 = vunpack.c.l.b16 %v875
    %v892 = vunpack.c.l.b16 %v876
    %v893 = vunpack.c.l.b16 %v877
    %v894 = vunpack.c.l.b16 %v878
    %v895 = vunpack.c.l.b16 %v879
    %v896 = vunpack.c.l.b16 %v880
    %v897 = vunpack.c.l.b16 %v881
    %v898 = vpack.c.b16 %v891, %v890
    %v899 = vpack.c.b16 %v893, %v892
    %v900 = vpack.c.b16 %v895, %v894
    %v901 = vpack.c.b16 %v897, %v896
    %v907 = vsel %vm119, %v865, 0
    %v910 = vsel %vm119, %v866, 0
    %v913 = vsel %vm119, %v867, 0
    %v916 = vsel %vm119, %v868, 0
    %v919 = vsel %vm119, %v869, 0
    %v922 = vsel %vm119, %v870, 0
    %v925 = vsel %vm119, %v871, 0
    %v928 = vsel %vm119, %v872, 0
    %930 = vmatprep.subr.bf16.mxu0 0
    %931 = vmatpush1.bf16.msra.mxu0 %v898
    %932 = vmatprep.subr.bf16.mxu0 0
    %933 = vmatpush1.bf16.msra.mxu0 %v899
    %934 = vmatprep.subr.bf16.mxu0 0
    %935 = vmatpush1.bf16.msra.mxu0 %v900
    %936 = vmatprep.subr.bf16.mxu0 0
    %937 = vmatpush1.bf16.msra.mxu0 %v901
    %938 = vmatprep.subr.bf16.mxu0 0
    %939 = vmatpush1.bf16.msra.mxu0 0
    %940 = vmatprep.subr.bf16.mxu0 0
    %941 = vmatpush1.bf16.msra.mxu0 0
    %942 = vmatprep.subr.bf16.mxu0 0
    %943 = vmatpush1.bf16.msra.mxu0 0
    %944 = vmatprep.subr.bf16.mxu0 0
    %945 = vmatpush1.bf16.msra.mxu0 0
    %946 = vmatprep.subr.bf16.mxu0 0
    %947 = vmatpush1.bf16.msra.mxu0 0
    %948 = vmatprep.subr.bf16.mxu0 0
    %949 = vmatpush1.bf16.msra.mxu0 0
    %950 = vmatprep.subr.bf16.mxu0 0
    %951 = vmatpush1.bf16.msra.mxu0 0
    %952 = vmatprep.subr.bf16.mxu0 0
    %953 = vmatpush1.bf16.msra.mxu0 0
    %954 = vmatprep.subr.bf16.mxu0 0
    %955 = vmatpush1.bf16.msra.mxu0 0
    %956 = vmatprep.subr.bf16.mxu0 0
    %957 = vmatpush1.bf16.msra.mxu0 0
    %958 = vmatprep.subr.bf16.mxu0 0
    %959 = vmatpush1.bf16.msra.mxu0 0
    %960 = vmatprep.subr.bf16.mxu0 0
    %961 = vmatpush1.bf16.msra.mxu0 0
    %962 = vmatprep.mubr.bf16.mxu0 0
    %963 = vmatmul.mubr.bf16.gmra.mrb[0].mxu0 %v907
    %v964 = vpop.f32.mrb[0].mxu0
    %v965 = vadd.f32 0.0, %v964
    %v966 = vpop.f32.mrb[0].mxu0
    %v967 = vpop.f32.mrb[0].mxu0
    %v968 = vadd.f32 0.0, %v967
    %v969 = vpop.f32.mrb[0].mxu0
    %970 = vmatprep.mubr.bf16.mxu0 0
    %971 = vmatmul.mubr.bf16.gmra.mrb[0].mxu0 %v910
    %v972 = vpop.f32.mrb[0].mxu0
    %v973 = vadd.f32 0.0, %v972
    %v974 = vpop.f32.mrb[0].mxu0
    %v975 = vpop.f32.mrb[0].mxu0
    %v976 = vadd.f32 0.0, %v975
    %v977 = vpop.f32.mrb[0].mxu0
    %978 = vmatprep.mubr.bf16.mxu0 0
    %979 = vmatmul.mubr.bf16.gmra.mrb[0].mxu0 %v913
    %v980 = vpop.f32.mrb[0].mxu0
    %v981 = vadd.f32 0.0, %v980
    %v982 = vpop.f32.mrb[0].mxu0
    %v983 = vpop.f32.mrb[0].mxu0
    %v984 = vadd.f32 0.0, %v983
    %v985 = vpop.f32.mrb[0].mxu0
    %986 = vmatprep.mubr.bf16.mxu0 0
    %987 = vmatmul.mubr.bf16.gmra.mrb[0].mxu0 %v916
    %v988 = vpop.f32.mrb[0].mxu0
    %v989 = vadd.f32 0.0, %v988
    %v990 = vpop.f32.mrb[0].mxu0
    %v991 = vpop.f32.mrb[0].mxu0
    %v992 = vadd.f32 0.0, %v991
    %v993 = vpop.f32.mrb[0].mxu0
    %994 = vmatprep.mubr.bf16.mxu0 0
    %995 = vmatmul.mubr.bf16.gmra.mrb[0].mxu0 %v919
    %v996 = vpop.f32.mrb[0].mxu0
    %v997 = vadd.f32 0.0, %v996
    %v998 = vpop.f32.mrb[0].mxu0
    %v999 = vpop.f32.mrb[0].mxu0
    %v1000 = vadd.f32 0.0, %v999
    %v1001 = vpop.f32.mrb[0].mxu0
    %1002 = vmatprep.mubr.bf16.mxu0 0
    %1003 = vmatmul.mubr.bf16.gmra.mrb[0].mxu0 %v922
    %v1004 = vpop.f32.mrb[0].mxu0
    %v1005 = vadd.f32 0.0, %v1004
    %v1006 = vpop.f32.mrb[0].mxu0
    %v1007 = vpop.f32.mrb[0].mxu0
    %v1008 = vadd.f32 0.0, %v1007
    %v1009 = vpop.f32.mrb[0].mxu0
    %1010 = vmatprep.mubr.bf16.mxu0 0
    %1011 = vmatmul.mubr.bf16.gmra.mrb[0].mxu0 %v925
    %v1012 = vpop.f32.mrb[0].mxu0
    %v1013 = vadd.f32 0.0, %v1012
    %v1014 = vpop.f32.mrb[0].mxu0
    %v1015 = vpop.f32.mrb[0].mxu0
    %v1016 = vadd.f32 0.0, %v1015
    %v1017 = vpop.f32.mrb[0].mxu0
    %1018 = vmatprep.mubr.bf16.mxu0 0
    %1019 = vmatmul.mubr.bf16.gmra.mrb[0].mxu0 %v928
    %v1020 = vpop.f32.mrb[0].mxu0
    %v1021 = vadd.f32 0.0, %v1020
    %v1022 = vpop.f32.mrb[0].mxu0
    %v1023 = vpop.f32.mrb[0].mxu0
    %v1024 = vadd.f32 0.0, %v1023
    %v1025 = vpop.f32.mrb[0].mxu0
    %1026 = vdwg.mxu0
    %v1035 = vunpack.c.l.b16 %v841
    %v1036 = vunpack.c.l.b16 %v842
    %v1037 = vunpack.c.l.b16 %v843
    %v1038 = vunpack.c.l.b16 %v844
    %v1039 = vunpack.c.l.b16 %v845
    %v1040 = vunpack.c.l.b16 %v846
    %v1041 = vunpack.c.l.b16 %v847
    %v1042 = vunpack.c.l.b16 %v848
    %v1043 = vpack.c.b16 %v1036, %v1035
    %v1044 = vpack.c.b16 %v1038, %v1037
    %v1045 = vpack.c.b16 %v1040, %v1039
    %v1046 = vpack.c.b16 %v1042, %v1041
    %v1052 = vsel %vm119, %v833, 0
    %v1055 = vsel %vm119, %v834, 0
    %v1058 = vsel %vm119, %v835, 0
    %v1061 = vsel %vm119, %v836, 0
    %v1064 = vsel %vm119, %v837, 0
    %v1067 = vsel %vm119, %v838, 0
    %v1070 = vsel %vm119, %v839, 0
    %v1073 = vsel %vm119, %v840, 0
    %1075 = vmatprep.subr.bf16.mxu0 0
    %1076 = vmatpush1.bf16.msra.mxu0 %v1043
    %1077 = vmatprep.subr.bf16.mxu0 0
    %1078 = vmatpush1.bf16.msra.mxu0 %v1044
    %1079 = vmatprep.subr.bf16.mxu0 0
    %1080 = vmatpush1.bf16.msra.mxu0 %v1045
    %1081 = vmatprep.subr.bf16.mxu0 0
    %1082 = vmatpush1.bf16.msra.mxu0 %v1046
    %1083 = vmatprep.subr.bf16.mxu0 0
    %1084 = vmatpush1.bf16.msra.mxu0 0
    %1085 = vmatprep.subr.bf16.mxu0 0
    %1086 = vmatpush1.bf16.msra.mxu0 0
    %1087 = vmatprep.subr.bf16.mxu0 0
    %1088 = vmatpush1.bf16.msra.mxu0 0
    %1089 = vmatprep.subr.bf16.mxu0 0
    %1090 = vmatpush1.bf16.msra.mxu0 0
    %1091 = vmatprep.subr.bf16.mxu0 0
    %1092 = vmatpush1.bf16.msra.mxu0 0
    %1093 = vmatprep.subr.bf16.mxu0 0
    %1094 = vmatpush1.bf16.msra.mxu0 0
    %1095 = vmatprep.subr.bf16.mxu0 0
    %1096 = vmatpush1.bf16.msra.mxu0 0
    %1097 = vmatprep.subr.bf16.mxu0 0
    %1098 = vmatpush1.bf16.msra.mxu0 0
    %1099 = vmatprep.subr.bf16.mxu0 0
    %1100 = vmatpush1.bf16.msra.mxu0 0
    %1101 = vmatprep.subr.bf16.mxu0 0
    %1102 = vmatpush1.bf16.msra.mxu0 0
    %1103 = vmatprep.subr.bf16.mxu0 0
    %1104 = vmatpush1.bf16.msra.mxu0 0
    %1105 = vmatprep.subr.bf16.mxu0 0
    %1106 = vmatpush1.bf16.msra.mxu0 0
    %1107 = vmatprep.mubr.bf16.mxu0 0
    %1108 = vmatmul.mubr.bf16.gmra.mrb[0].mxu0 %v1052
    %v1109 = vpop.f32.mrb[0].mxu0
    %v1110 = vadd.f32 %v965, %v1109
    %v1111 = vpop.f32.mrb[0].mxu0
    %v1112 = vpop.f32.mrb[0].mxu0
    %v1113 = vadd.f32 %v968, %v1112
    %v1114 = vpop.f32.mrb[0].mxu0
    %1115 = vmatprep.mubr.bf16.mxu0 0
    %1116 = vmatmul.mubr.bf16.gmra.mrb[0].mxu0 %v1055
    %v1117 = vpop.f32.mrb[0].mxu0
    %v1118 = vadd.f32 %v973, %v1117
    %v1119 = vpop.f32.mrb[0].mxu0
    %v1120 = vpop.f32.mrb[0].mxu0
    %v1121 = vadd.f32 %v976, %v1120
    %v1122 = vpop.f32.mrb[0].mxu0
    %1123 = vmatprep.mubr.bf16.mxu0 0
    %1124 = vmatmul.mubr.bf16.gmra.mrb[0].mxu0 %v1058
    %v1125 = vpop.f32.mrb[0].mxu0
    %v1126 = vadd.f32 %v981, %v1125
    %v1127 = vpop.f32.mrb[0].mxu0
    %v1128 = vpop.f32.mrb[0].mxu0
    %v1129 = vadd.f32 %v984, %v1128
    %v1130 = vpop.f32.mrb[0].mxu0
    %1131 = vmatprep.mubr.bf16.mxu0 0
    %1132 = vmatmul.mubr.bf16.gmra.mrb[0].mxu0 %v1061
    %v1133 = vpop.f32.mrb[0].mxu0
    %v1134 = vadd.f32 %v989, %v1133
    %v1135 = vpop.f32.mrb[0].mxu0
    %v1136 = vpop.f32.mrb[0].mxu0
    %v1137 = vadd.f32 %v992, %v1136
    %v1138 = vpop.f32.mrb[0].mxu0
    %1139 = vmatprep.mubr.bf16.mxu0 0
    %1140 = vmatmul.mubr.bf16.gmra.mrb[0].mxu0 %v1064
    %v1141 = vpop.f32.mrb[0].mxu0
    %v1142 = vadd.f32 %v997, %v1141
    %v1143 = vpop.f32.mrb[0].mxu0
    %v1144 = vpop.f32.mrb[0].mxu0
    %v1145 = vadd.f32 %v1000, %v1144
    %v1146 = vpop.f32.mrb[0].mxu0
    %1147 = vmatprep.mubr.bf16.mxu0 0
    %1148 = vmatmul.mubr.bf16.gmra.mrb[0].mxu0 %v1067
    %v1149 = vpop.f32.mrb[0].mxu0
    %v1150 = vadd.f32 %v1005, %v1149
    %v1151 = vpop.f32.mrb[0].mxu0
    %v1152 = vpop.f32.mrb[0].mxu0
    %v1153 = vadd.f32 %v1008, %v1152
    %v1154 = vpop.f32.mrb[0].mxu0
    %1155 = vmatprep.mubr.bf16.mxu0 0
    %1156 = vmatmul.mubr.bf16.gmra.mrb[0].mxu0 %v1070
    %v1157 = vpop.f32.mrb[0].mxu0
    %v1158 = vadd.f32 %v1013, %v1157
    %v1159 = vpop.f32.mrb[0].mxu0
    %v1160 = vpop.f32.mrb[0].mxu0
    %v1161 = vadd.f32 %v1016, %v1160
    %v1162 = vpop.f32.mrb[0].mxu0
    %1163 = vmatprep.mubr.bf16.mxu0 0
    %1164 = vmatmul.mubr.bf16.gmra.mrb[0].mxu0 %v1073
    %v1165 = vpop.f32.mrb[0].mxu0
    %v1166 = vadd.f32 %v1021, %v1165
    %v1167 = vpop.f32.mrb[0].mxu0
    %v1168 = vpop.f32.mrb[0].mxu0
    %v1169 = vadd.f32 %v1024, %v1168
    %v1170 = vpop.f32.mrb[0].mxu0
    %1171 = vdwg.mxu0
    %v1172 = vld [vmem:[%s575] sm:$0xff]
    %v1173 = vld [vmem:[%s575 + $0x8] sm:$0xff]
    %v1174 = vld [vmem:[%s575 + $0x10] sm:$0xff]
    %v1175 = vld [vmem:[%s575 + $0x18] sm:$0xff]
    %v1176 = vld [vmem:[%s575 + $0x20] sm:$0xff]
    %v1177 = vld [vmem:[%s575 + $0x28] sm:$0xff]
    %v1178 = vld [vmem:[%s575 + $0x30] sm:$0xff]
    %v1179 = vld [vmem:[%s575 + $0x38] sm:$0xff]
    %v1180 = vld [vmem:[%s575 + $0x40] sm:$0xff]
    %v1181 = vld [vmem:[%s575 + $0x48] sm:$0xff]
    %v1182 = vld [vmem:[%s575 + $0x50] sm:$0xff]
    %v1183 = vld [vmem:[%s575 + $0x58] sm:$0xff]
    %v1184 = vld [vmem:[%s575 + $0x60] sm:$0xff]
    %v1185 = vld [vmem:[%s575 + $0x68] sm:$0xff]
    %v1186 = vld [vmem:[%s575 + $0x70] sm:$0xff]
    %v1187 = vld [vmem:[%s575 + $0x78] sm:$0xff]
    %v1188 = vpack.c.bf16 %v1173, %v1172
    %v1189 = vpack.c.bf16 %v1175, %v1174
    %v1190 = vpack.c.bf16 %v1177, %v1176
    %v1191 = vpack.c.bf16 %v1179, %v1178
    %v1192 = vpack.c.bf16 %v1181, %v1180
    %v1193 = vpack.c.bf16 %v1183, %v1182
    %v1194 = vpack.c.bf16 %v1185, %v1184
    %v1195 = vpack.c.bf16 %v1187, %v1186
    %s1196 = scalar_lea.vmem [#allocation11], 64
    %v1197 = vld [vmem:[%s1196] sm:$0xf]
    %v1198 = vld [vmem:[%s1196 + $0x4] sm:$0xf]
    %v1199 = vld [vmem:[%s1196 + $0x8] sm:$0xf]
    %v1200 = vld [vmem:[%s1196 + $0xc] sm:$0xf]
    %v1201 = vld [vmem:[%s1196 + $0x10] sm:$0xf]
    %v1202 = vld [vmem:[%s1196 + $0x14] sm:$0xf]
    %v1203 = vld [vmem:[%s1196 + $0x18] sm:$0xf]
    %v1204 = vld [vmem:[%s1196 + $0x1c] sm:$0xf]
    %v1213 = vunpack.c.l.b16 %v1197
    %v1214 = vunpack.c.l.b16 %v1198
    %v1215 = vunpack.c.l.b16 %v1199
    %v1216 = vunpack.c.l.b16 %v1200
    %v1217 = vunpack.c.l.b16 %v1201
    %v1218 = vunpack.c.l.b16 %v1202
    %v1219 = vunpack.c.l.b16 %v1203
    %v1220 = vunpack.c.l.b16 %v1204
    %v1221 = vpack.c.b16 %v1214, %v1213
    %v1222 = vpack.c.b16 %v1216, %v1215
    %v1223 = vpack.c.b16 %v1218, %v1217
    %v1224 = vpack.c.b16 %v1220, %v1219
    %v1230 = vsel %vm119, %v1188, 0
    %v1233 = vsel %vm119, %v1189, 0
    %v1236 = vsel %vm119, %v1190, 0
    %v1239 = vsel %vm119, %v1191, 0
    %v1242 = vsel %vm119, %v1192, 0
    %v1245 = vsel %vm119, %v1193, 0
    %v1248 = vsel %vm119, %v1194, 0
    %v1251 = vsel %vm119, %v1195, 0
    %1253 = vmatprep.subr.bf16.mxu0 0
    %1254 = vmatpush1.bf16.msra.mxu0 %v1221
    %1255 = vmatprep.subr.bf16.mxu0 0
    %1256 = vmatpush1.bf16.msra.mxu0 %v1222
    %1257 = vmatprep.subr.bf16.mxu0 0
    %1258 = vmatpush1.bf16.msra.mxu0 %v1223
    %1259 = vmatprep.subr.bf16.mxu0 0
    %1260 = vmatpush1.bf16.msra.mxu0 %v1224
    %1261 = vmatprep.subr.bf16.mxu0 0
    %1262 = vmatpush1.bf16.msra.mxu0 0
    %1263 = vmatprep.subr.bf16.mxu0 0
    %1264 = vmatpush1.bf16.msra.mxu0 0
    %1265 = vmatprep.subr.bf16.mxu0 0
    %1266 = vmatpush1.bf16.msra.mxu0 0
    %1267 = vmatprep.subr.bf16.mxu0 0
    %1268 = vmatpush1.bf16.msra.mxu0 0
    %1269 = vmatprep.subr.bf16.mxu0 0
    %1270 = vmatpush1.bf16.msra.mxu0 0
    %1271 = vmatprep.subr.bf16.mxu0 0
    %1272 = vmatpush1.bf16.msra.mxu0 0
    %1273 = vmatprep.subr.bf16.mxu0 0
    %1274 = vmatpush1.bf16.msra.mxu0 0
    %1275 = vmatprep.subr.bf16.mxu0 0
    %1276 = vmatpush1.bf16.msra.mxu0 0
    %1277 = vmatprep.subr.bf16.mxu0 0
    %1278 = vmatpush1.bf16.msra.mxu0 0
    %1279 = vmatprep.subr.bf16.mxu0 0
    %1280 = vmatpush1.bf16.msra.mxu0 0
    %1281 = vmatprep.subr.bf16.mxu0 0
    %1282 = vmatpush1.bf16.msra.mxu0 0
    %1283 = vmatprep.subr.bf16.mxu0 0
    %1284 = vmatpush1.bf16.msra.mxu0 0
    %1285 = vmatprep.mubr.bf16.mxu0 0
    %1286 = vmatmul.mubr.bf16.gmra.mrb[0].mxu0 %v1230
    %v1287 = vpop.f32.mrb[0].mxu0
    %v1288 = vadd.f32 0.0, %v1287
    %v1289 = vpop.f32.mrb[0].mxu0
    %v1290 = vpop.f32.mrb[0].mxu0
    %v1291 = vadd.f32 0.0, %v1290
    %v1292 = vpop.f32.mrb[0].mxu0
    %1293 = vmatprep.mubr.bf16.mxu0 0
    %1294 = vmatmul.mubr.bf16.gmra.mrb[0].mxu0 %v1233
    %v1295 = vpop.f32.mrb[0].mxu0
    %v1296 = vadd.f32 0.0, %v1295
    %v1297 = vpop.f32.mrb[0].mxu0
    %v1298 = vpop.f32.mrb[0].mxu0
    %v1299 = vadd.f32 0.0, %v1298
    %v1300 = vpop.f32.mrb[0].mxu0
    %1301 = vmatprep.mubr.bf16.mxu0 0
    %1302 = vmatmul.mubr.bf16.gmra.mrb[0].mxu0 %v1236
    %v1303 = vpop.f32.mrb[0].mxu0
    %v1304 = vadd.f32 0.0, %v1303
    %v1305 = vpop.f32.mrb[0].mxu0
    %v1306 = vpop.f32.mrb[0].mxu0
    %v1307 = vadd.f32 0.0, %v1306
    %v1308 = vpop.f32.mrb[0].mxu0
    %1309 = vmatprep.mubr.bf16.mxu0 0
    %1310 = vmatmul.mubr.bf16.gmra.mrb[0].mxu0 %v1239
    %v1311 = vpop.f32.mrb[0].mxu0
    %v1312 = vadd.f32 0.0, %v1311
    %v1313 = vpop.f32.mrb[0].mxu0
    %v1314 = vpop.f32.mrb[0].mxu0
    %v1315 = vadd.f32 0.0, %v1314
    %v1316 = vpop.f32.mrb[0].mxu0
    %1317 = vmatprep.mubr.bf16.mxu0 0
    %1318 = vmatmul.mubr.bf16.gmra.mrb[0].mxu0 %v1242
    %v1319 = vpop.f32.mrb[0].mxu0
    %v1320 = vadd.f32 0.0, %v1319
    %v1321 = vpop.f32.mrb[0].mxu0
    %v1322 = vpop.f32.mrb[0].mxu0
    %v1323 = vadd.f32 0.0, %v1322
    %v1324 = vpop.f32.mrb[0].mxu0
    %1325 = vmatprep.mubr.bf16.mxu0 0
    %1326 = vmatmul.mubr.bf16.gmra.mrb[0].mxu0 %v1245
    %v1327 = vpop.f32.mrb[0].mxu0
    %v1328 = vadd.f32 0.0, %v1327
    %v1329 = vpop.f32.mrb[0].mxu0
    %v1330 = vpop.f32.mrb[0].mxu0
    %v1331 = vadd.f32 0.0, %v1330
    %v1332 = vpop.f32.mrb[0].mxu0
    %1333 = vmatprep.mubr.bf16.mxu0 0
    %1334 = vmatmul.mubr.bf16.gmra.mrb[0].mxu0 %v1248
    %v1335 = vpop.f32.mrb[0].mxu0
    %v1336 = vadd.f32 0.0, %v1335
    %v1337 = vpop.f32.mrb[0].mxu0
    %v1338 = vpop.f32.mrb[0].mxu0
    %v1339 = vadd.f32 0.0, %v1338
    %v1340 = vpop.f32.mrb[0].mxu0
    %1341 = vmatprep.mubr.bf16.mxu0 0
    %1342 = vmatmul.mubr.bf16.gmra.mrb[0].mxu0 %v1251
    %v1343 = vpop.f32.mrb[0].mxu0
    %v1344 = vadd.f32 0.0, %v1343
    %v1345 = vpop.f32.mrb[0].mxu0
    %v1346 = vpop.f32.mrb[0].mxu0
    %v1347 = vadd.f32 0.0, %v1346
    %v1348 = vpop.f32.mrb[0].mxu0
    %1349 = vdwg.mxu0
    %v1350 = vadd.f32 %v1110, %v1288
    %v1351 = vadd.f32 %v1113, %v1291
    %v1352 = vadd.f32 %v1118, %v1296
    %v1353 = vadd.f32 %v1121, %v1299
    %v1354 = vadd.f32 %v1126, %v1304
    %v1355 = vadd.f32 %v1129, %v1307
    %v1356 = vadd.f32 %v1134, %v1312
    %v1357 = vadd.f32 %v1137, %v1315
    %v1358 = vadd.f32 %v1142, %v1320
    %v1359 = vadd.f32 %v1145, %v1323
    %v1360 = vadd.f32 %v1150, %v1328
    %v1361 = vadd.f32 %v1153, %v1331
    %v1362 = vadd.f32 %v1158, %v1336
    %v1363 = vadd.f32 %v1161, %v1339
    %v1364 = vadd.f32 %v1166, %v1344
    %v1365 = vadd.f32 %v1169, %v1347
    %v1366 = vld [vmem:[#allocation12] sm:$0x1]
    %v1368 = vlaneseq
    %v1369 = vshrl.u32 %v1368, 7
    %v1370 = vsub.s32 0, %v1369
    %v1371 = vrot.slane %v1366, %v1370
    %v1373 = vadd.f32 %v1350, %v1371
    %v1374 = vadd.f32 %v1351, %v1371
    %v1375 = vadd.f32 %v1352, %v1371
    %v1376 = vadd.f32 %v1353, %v1371
    %v1377 = vadd.f32 %v1354, %v1371
    %v1378 = vadd.f32 %v1355, %v1371
    %v1379 = vadd.f32 %v1356, %v1371
    %v1380 = vadd.f32 %v1357, %v1371
    %v1381 = vadd.f32 %v1358, %v1371
    %v1382 = vadd.f32 %v1359, %v1371
    %v1383 = vadd.f32 %v1360, %v1371
    %v1384 = vadd.f32 %v1361, %v1371
    %v1385 = vadd.f32 %v1362, %v1371
    %v1386 = vadd.f32 %v1363, %v1371
    %v1387 = vadd.f32 %v1364, %v1371
    %v1388 = vadd.f32 %v1365, %v1371
    %v1389 = vmax.f32 %v1373, 0.0
    %v1390 = vmax.f32 %v1374, 0.0
    %v1391 = vmax.f32 %v1375, 0.0
    %v1392 = vmax.f32 %v1376, 0.0
    %v1393 = vmax.f32 %v1377, 0.0
    %v1394 = vmax.f32 %v1378, 0.0
    %v1395 = vmax.f32 %v1379, 0.0
    %v1396 = vmax.f32 %v1380, 0.0
    %v1397 = vmax.f32 %v1381, 0.0
    %v1398 = vmax.f32 %v1382, 0.0
    %v1399 = vmax.f32 %v1383, 0.0
    %v1400 = vmax.f32 %v1384, 0.0
    %v1401 = vmax.f32 %v1385, 0.0
    %v1402 = vmax.f32 %v1386, 0.0
    %v1403 = vmax.f32 %v1387, 0.0
    %v1404 = vmax.f32 %v1388, 0.0
    %v1405 = vpack.c.bf16 %v1389, %v1389
    %v1406 = vpack.c.bf16 %v1390, %v1390
    %v1407 = vpack.c.bf16 %v1391, %v1391
    %v1408 = vpack.c.bf16 %v1392, %v1392
    %v1409 = vpack.c.bf16 %v1393, %v1393
    %v1410 = vpack.c.bf16 %v1394, %v1394
    %v1411 = vpack.c.bf16 %v1395, %v1395
    %v1412 = vpack.c.bf16 %v1396, %v1396
    %v1413 = vpack.c.bf16 %v1397, %v1397
    %v1414 = vpack.c.bf16 %v1398, %v1398
    %v1415 = vpack.c.bf16 %v1399, %v1399
    %v1416 = vpack.c.bf16 %v1400, %v1400
    %v1417 = vpack.c.bf16 %v1401, %v1401
    %v1418 = vpack.c.bf16 %v1402, %v1402
    %v1419 = vpack.c.bf16 %v1403, %v1403
    %v1420 = vpack.c.bf16 %v1404, %v1404
    %vm1421 = vcmask 519168
    %1422 = vst.msk [vmem:[#allocation14] sm:$0xf] %vm1421, %v1405
    %1423 = vst.msk [vmem:[#allocation14 + $0x4] sm:$0xf] %vm1421, %v1406
    %1424 = vst.msk [vmem:[#allocation14 + $0x8] sm:$0xf] %vm1421, %v1407
    %1425 = vst.msk [vmem:[#allocation14 + $0xc] sm:$0xf] %vm1421, %v1408
    %1426 = vst.msk [vmem:[#allocation14 + $0x10] sm:$0xf] %vm1421, %v1409
    %1427 = vst.msk [vmem:[#allocation14 + $0x14] sm:$0xf] %vm1421, %v1410
    %1428 = vst.msk [vmem:[#allocation14 + $0x18] sm:$0xf] %vm1421, %v1411
    %1429 = vst.msk [vmem:[#allocation14 + $0x1c] sm:$0xf] %vm1421, %v1412
    %1430 = vst.msk [vmem:[#allocation14 + $0x20] sm:$0xf] %vm1421, %v1413
    %1431 = vst.msk [vmem:[#allocation14 + $0x24] sm:$0xf] %vm1421, %v1414
    %1432 = vst.msk [vmem:[#allocation14 + $0x28] sm:$0xf] %vm1421, %v1415
    %1433 = vst.msk [vmem:[#allocation14 + $0x2c] sm:$0xf] %vm1421, %v1416
    %1434 = vst.msk [vmem:[#allocation14 + $0x30] sm:$0xf] %vm1421, %v1417
    %1435 = vst.msk [vmem:[#allocation14 + $0x34] sm:$0xf] %vm1421, %v1418
    %1436 = vst.msk [vmem:[#allocation14 + $0x38] sm:$0xf] %vm1421, %v1419
    %1437 = vst.msk [vmem:[#allocation14 + $0x3c] sm:$0xf] %vm1421, %v1420
    // Predicated region
    $region50: #{tpu_custom_call.1} parent=1 // pred_check
      _
    $region51: #{tpu_custom_call.1} parent=1 // pred_check_branch
      %1439 = sbr.rel (0) target = $region53
    $region52: #{tpu_custom_call.1} parent=1 // pred_region
      %s1441 = ssub.s32 1024, 1024
      %1442 = vsyncadd [#allocation5], %s1441
      %s1443 = sshll.u32 [#allocation14], 4
      %s1444 = int_to_ptr.vmem [resolvable:$true] %s1443
      %1449 = dma.vmem_to_hbm [thread:$0]  %s1444, 1024, %s6, [#allocation5], 64, 64, 4
    $region53: #{tpu_custom_call.1} parent=1 // pred_fallthru
      _
    // Predicated region
    $region54: #{tpu_custom_call.1} parent=1 // pred_check
      _
    $region55: #{tpu_custom_call.1} parent=1 // pred_check_branch
      %1451 = sbr.rel (0) target = $region57
    $region56: #{tpu_custom_call.1} parent=1 // pred_region
      %1452 = dma.done [#allocation5], 1024
    $region57: #{tpu_custom_call.1} parent=1 // pred_fallthru
      _
    %1453 = vsyncpa [#allocation4], 1
    %1454 = vsyncpa [#allocation7], 1
    %1455 = vsyncpa [#allocation10], 1
    %1456 = vsyncpa [#allocation13], 1
    %1457 = vsyncpa [#allocation5], 1

</llo_original>
